<compile_context>
chip_gen: v6e
topology: v6e:2x2x1
jax: 0.10.0
libtpu: 0.0.40
codegen_flags: <defaults>
</compile_context>

<pallas_src>
import functools

import jax
import jax.numpy as jnp
from jax import lax
from jax.experimental import pallas as pl
from jax.experimental.pallas import tpu as pltpu


def _residual_block_kernel(x_ref, w1_ref, s1_ref, b1_ref, w2_ref, s2_ref, b2_ref,
                           *rest, th, w_img, cin, cout, has_downsample):
    # x_ref   : (H, W*Cin)                 flattened input rows (one batch elem)
    # w1_ref  : (3, (W+2)*Cin,  W*Cout)    banded conv1 weight (one slab per kh)
    # w2_ref  : (3, (W+2)*Cout, W*Cout)    banded conv2 weight
    # wd_ref  : (W*Cin, W*Cout)            block-diagonal 1x1 downsample (optional)
    # s*/b*   : (1, W*Cout)                folded BatchNorm scale / bias (f32)
    # out_ref : (H, W*Cout)
    # scratch : xpad (H+4, (W+2)*Cin) f32, y1p (th+2, (W+2)*Cout) f32
    if has_downsample:
        wd_ref, out_ref, xpad_ref, y1p_ref = rest
    else:
        wd_ref = None
        out_ref, xpad_ref, y1p_ref = rest

    H = x_ref.shape[0]
    nb = H // th
    f32 = jnp.float32
    ddt = w1_ref.dtype                       # MXU operand dtype (bf16 by default)
    li, lip = w_img * cin, (w_img + 2) * cin
    lo, lop = w_img * cout, (w_img + 2) * cout

    # ---- stage x once into the zero-padded flat f32 scratch (halo-only memsets)
    xpad_ref[pl.ds(0, 2), :] = jnp.zeros((2, lip), f32)
    xpad_ref[pl.ds(H + 2, 2), :] = jnp.zeros((2, lip), f32)
    xpad_ref[pl.ds(2, H), pl.ds(0, cin)] = jnp.zeros((H, cin), f32)
    xpad_ref[pl.ds(2, H), pl.ds(lip - cin, cin)] = jnp.zeros((H, cin), f32)
    xpad_ref[pl.ds(2, H), pl.ds(cin, li)] = x_ref[...].astype(f32)

    # ---- zero the y1 column halo once (interior rewritten every block) --------
    y1p_ref[:, pl.ds(0, cout)] = jnp.zeros((th + 2, cout), f32)
    y1p_ref[:, pl.ds(lop - cout, cout)] = jnp.zeros((th + 2, cout), f32)

    # Folded-BN vectors are tiny (1 vreg each) -> hoist; the banded weight tiles
    # are read from VMEM at their use site (holding them in vregs would spill).
    s1, c1 = s1_ref[...], b1_ref[...]
    s2, c2 = s2_ref[...], b2_ref[...]

    def block_body(b):
        static = isinstance(b, int)
        row0 = b * th
        if not static and th % 8 == 0:
            row0 = pl.multiple_of(row0, 8)

        # -- conv1 (3x3, pad=1) + BN1 + ReLU for th+2 rows (1-row halo each side);
        #    each kh tap is one lane-dense MXU dot against the banded weight.
        acc1 = jnp.zeros((th + 2, lo), f32)
        for kh in range(3):
            xk = xpad_ref[pl.ds(row0 + kh, th + 2), :]            # (th+2, (W+2)*Cin)
            acc1 = acc1 + jnp.dot(xk.astype(ddt), w1_ref[kh],
                                  preferred_element_type=f32)
        y1 = jnp.maximum(acc1 * s1 + c1, 0.0)

        # conv2's zero padding: y1 rows outside the image must be zero; only the
        # first/last row blocks can contain such rows.
        if (not static) or b == 0 or b == nb - 1:
            g = b * th - 1 + lax.broadcasted_iota(jnp.int32, (th + 2, 1), 0)
            y1 = jnp.where((g >= 0) & (g < H), y1, 0.0)

        # write into the persistent column-padded scratch (interior lanes only)
        y1p_ref[:, pl.ds(cout, lo)] = y1

        # -- conv2 (3x3, pad=1) + BN2, reading y1 straight from the scratch -----
        acc2 = jnp.zeros((th, lo), f32)
        for kh in range(3):
            yk = y1p_ref[pl.ds(kh, th), :]                        # (th, (W+2)*Cout)
            acc2 = acc2 + jnp.dot(yk.astype(ddt), w2_ref[kh],
                                  preferred_element_type=f32)
        y2 = acc2 * s2 + c2

        # -- residual: block-diagonal 1x1 downsample dot, or plain identity add -
        xres = xpad_ref[pl.ds(row0 + 2, th), pl.ds(cin, li)]      # (th, W*Cin)
        if has_downsample:
            y2 = y2 + jnp.dot(xres.astype(ddt), wd_ref[...],
                              preferred_element_type=f32)
        else:
            y2 = y2 + xres

        # lane-dense (th, W*Cout) store
        out_ref[pl.ds(row0, th), :] = y2.astype(out_ref.dtype)

    if nb <= 8:                       # static row offsets, edge-only masking
        for b in range(nb):
            block_body(b)
    else:                             # many blocks: keep code size bounded
        def body(b, carry):
            block_body(b)
            return carry
        lax.fori_loop(0, nb, body, 0)


def _band_conv_weights(w, w_img):
    """w: (K, K, Ci, Co) HWIO -> (K, (W+2)*Ci, W*Co) block-banded per kh tap.

    out[kh, (q+kw)*Ci + ci, q*Co + co] = w[kh, kw, ci, co]  for q in [0, W)

    so dot(flat_padded_rows, out[kh]) performs the kw- and channel-contraction of
    tap row kh for every output column at once, yielding lane-dense (rows, W*Co).
    """
    K, _, Ci, Co = w.shape
    p = jnp.arange(w_img + 2)[:, None]          # padded input column
    q = jnp.arange(w_img)[None, :]              # output column
    kw = p - q                                  # (W+2, W)
    valid = (kw >= 0) & (kw < K)
    g = w[:, jnp.clip(kw, 0, K - 1)]            # (K, W+2, W, Ci, Co)
    g = jnp.where(valid[None, :, :, None, None], g, 0.0)
    g = jnp.transpose(g, (0, 1, 3, 2, 4))       # (K, W+2, Ci, W, Co)
    return g.reshape(K, (w_img + 2) * Ci, w_img * Co)


def _band_downsample_weight(wd, w_img):
    """wd: (Ci, Co) 1x1 conv -> (W*Ci, W*Co) block-diagonal weight."""
    return jnp.kron(jnp.eye(w_img, dtype=wd.dtype), wd)


def _pick_block_rows(H, w_img):
    # Largest divisor of H keeping the lane-dense row block (th*W spatial sites)
    # around <= 1024 — big M amortizes MXU fill / per-block overhead, while the
    # f32 accumulators stay a handful of vregs.
    th = 1
    for t in range(1, H + 1):
        if H % t == 0 and t * w_img <= 1024:
            th = t
    return th


def residual_block(x, w1, s1, b1, w2, s2, b2, wd=None, *, stride=1,
                   block_rows=None, compute_dtype=jnp.bfloat16):
    """x: (N, H, W, Cin) NHWC. w1: (3,3,Cin,Cout), w2: (3,3,Cout,Cout) HWIO.
    s*/b*: folded eval-mode BatchNorm scale/bias, shape (Cout,). wd: (Cin, Cout)
    1x1 downsample weight, or None (identity shortcut; requires Cin == Cout).
    compute_dtype: MXU operand dtype (bf16 default; accumulation is f32).
    Returns (N, H, W, Cout) in x.dtype."""
    assert stride == 1, "only stride=1 implemented"  # TODO(synk): stride > 1
    N, H, W, Cin = x.shape
    K, K2, _, Cout = w1.shape
    assert K == 3 and K2 == 3, "only kernel_size=3 implemented"
    has_downsample = wd is not None
    if not has_downsample:
        assert Cin == Cout, "identity shortcut requires in_channels == out_channels"

    th = _pick_block_rows(H, W) if block_rows is None else block_rows
    assert H % th == 0, "block_rows must divide H"

    cdt = compute_dtype
    f32 = jnp.float32

    # lane-dense flattened views / banded weights (all built once, wrapper side;
    # the x/out reshapes are free for contiguous NHWC arrays in HBM)
    xf = x.reshape(N, H, W * Cin).astype(cdt)
    w1b = _band_conv_weights(w1.astype(f32), W).astype(cdt)   # (3,(W+2)Cin, W*Cout)
    w2b = _band_conv_weights(w2.astype(f32), W).astype(cdt)   # (3,(W+2)Cout,W*Cout)
    s1t = jnp.tile(s1.astype(f32).reshape(1, Cout), (1, W))   # (1, W*Cout)
    b1t = jnp.tile(b1.astype(f32).reshape(1, Cout), (1, W))
    s2t = jnp.tile(s2.astype(f32).reshape(1, Cout), (1, W))
    b2t = jnp.tile(b2.astype(f32).reshape(1, Cout), (1, W))

    operands = [xf, w1b, s1t, b1t, w2b, s2t, b2t]
    in_specs = [
        pl.BlockSpec((None, H, W * Cin), lambda n: (n, 0, 0)),            # x
        pl.BlockSpec((3, (W + 2) * Cin, W * Cout), lambda n: (0, 0, 0)),  # w1 band
        pl.BlockSpec((1, W * Cout), lambda n: (0, 0)),                    # s1
        pl.BlockSpec((1, W * Cout), lambda n: (0, 0)),                    # b1
        pl.BlockSpec((3, (W + 2) * Cout, W * Cout), lambda n: (0, 0, 0)), # w2 band
        pl.BlockSpec((1, W * Cout), lambda n: (0, 0)),                    # s2
        pl.BlockSpec((1, W * Cout), lambda n: (0, 0)),                    # b2
    ]
    if has_downsample:
        wdb = _band_downsample_weight(wd.astype(f32).reshape(Cin, Cout), W).astype(cdt)
        operands.append(wdb)
        in_specs.append(pl.BlockSpec((W * Cin, W * Cout), lambda n: (0, 0)))

    scratch_shapes = [
        pltpu.VMEM((H + 4, (W + 2) * Cin, ), jnp.float32),   # zero-padded staged x
        pltpu.VMEM((th + 2, (W + 2) * Cout), jnp.float32),   # column-padded y1 slab
    ]

    # scoped-VMEM sizing: 2x double-buffered in/out blocks + persistent scratch.
    isz = jnp.dtype(cdt).itemsize
    osz = jnp.dtype(x.dtype).itemsize
    need = 2 * (H * W * Cin * isz
                + 3 * (W + 2) * Cin * W * Cout * isz
                + 3 * (W + 2) * Cout * W * Cout * isz
                + (W * Cin * W * Cout * isz if has_downsample else 0)
                + 4 * W * Cout * 4
                + H * W * Cout * osz)
    need += (H + 4) * (W + 2) * Cin * 4 + (th + 2) * (W + 2) * Cout * 4
    vmem_limit = None if need <= (16 << 20) else int(need * 3 // 2)

    kernel = functools.partial(
        _residual_block_kernel, th=th, w_img=W, cin=Cin, cout=Cout,
        has_downsample=has_downsample)

    out = pl.pallas_call(
        kernel,
        out_shape=jax.ShapeDtypeStruct((N, H, W * Cout), x.dtype),
        grid_spec=pltpu.PrefetchScalarGridSpec(
            num_scalar_prefetch=0,
            grid=(N,),
            in_specs=in_specs,
            out_specs=pl.BlockSpec((None, H, W * Cout), lambda n: (n, 0, 0)),
            scratch_shapes=scratch_shapes,
        ),
        compiler_params=pltpu.CompilerParams(
            dimension_semantics=("parallel",),
            vmem_limit_bytes=vmem_limit),
    )(*operands)
    return out.reshape(N, H, W, Cout)


def _reference(x, w1, s1, b1, w2, s2, b2, wd):
    dn = ("NHWC", "HWIO", "NHWC")
    y = lax.conv_general_dilated(x, w1, (1, 1), [(1, 1), (1, 1)], dimension_numbers=dn)
    y = jnp.maximum(y * s1 + b1, 0.0)
    y = lax.conv_general_dilated(y, w2, (1, 1), [(1, 1), (1, 1)], dimension_numbers=dn)
    y = y * s2 + b2
    if wd is None:
        res = x
    else:
        wd4 = wd.reshape(1, 1, wd.shape[0], wd.shape[1])
        res = lax.conv_general_dilated(x, wd4, (1, 1), [(0, 0), (0, 0)],
                                       dimension_numbers=dn)
    return y + res


if __name__ == "__main__":
    N, H, W, Cin, Cout, K = 2, 16, 16, 4, 8, 3
    ks = jax.random.split(jax.random.PRNGKey(0), 16)

    # PyTorch-style NCHW input, transposed once to NHWC for the kernel.
    x_nchw = jax.random.normal(ks[0], (N, Cin, H, W), jnp.float32)
    x = jnp.transpose(x_nchw, (0, 2, 3, 1))

    # conv weights (HWIO); 1x1 downsample present since Cin != Cout.
    w1 = 0.1 * jax.random.normal(ks[1], (K, K, Cin, Cout), jnp.float32)
    w2 = 0.1 * jax.random.normal(ks[2], (K, K, Cout, Cout), jnp.float32)
    wd = 0.1 * jax.random.normal(ks[3], (Cin, Cout), jnp.float32)

    # BatchNorm (eval mode) params, folded into per-channel scale/bias.
    eps = 1e-5
    g1 = 1.0 + 0.1 * jax.random.normal(ks[4], (Cout,), jnp.float32)
    be1 = 0.1 * jax.random.normal(ks[5], (Cout,), jnp.float32)
    rm1 = 0.1 * jax.random.normal(ks[6], (Cout,), jnp.float32)
    rv1 = 1.0 + 0.5 * jax.random.uniform(ks[7], (Cout,), jnp.float32)
    s1 = g1 / jnp.sqrt(rv1 + eps)
    b1 = be1 - rm1 * s1

    g2 = 1.0 + 0.1 * jax.random.normal(ks[8], (Cout,), jnp.float32)
    be2 = 0.1 * jax.random.normal(ks[9], (Cout,), jnp.float32)
    rm2 = 0.1 * jax.random.normal(ks[10], (Cout,), jnp.float32)
    rv2 = 1.0 + 0.5 * jax.random.uniform(ks[11], (Cout,), jnp.float32)
    s2 = g2 / jnp.sqrt(rv2 + eps)
    b2 = be2 - rm2 * s2

    # --- main config: Cin != Cout (1x1 downsample), bf16 MXU operands ----------
    out = residual_block(x, w1, s1, b1, w2, s2, b2, wd, stride=1)
    out = jax.block_until_ready(out)
    ref = _reference(x, w1, s1, b1, w2, s2, b2, wd)
    assert out.shape == (N, H, W, Cout)
    assert jnp.allclose(out, ref, atol=2e-2, rtol=2e-2), "mismatch (bf16 path)"

    # --- identity-shortcut config (Cin == Cout), f32 compute, tight tolerance --
    xi = jax.random.normal(ks[12], (N, H, W, Cout), jnp.float32)
    w1i = 0.1 * jax.random.normal(ks[13], (K, K, Cout, Cout), jnp.float32)
    w2i = 0.1 * jax.random.normal(ks[14], (K, K, Cout, Cout), jnp.float32)
    out_i = residual_block(xi, w1i, s1, b1, w2i, s2, b2, None,
                           compute_dtype=jnp.float32)
    out_i = jax.block_until_ready(out_i)
    ref_i = _reference(xi, w1i, s1, b1, w2i, s2, b2, None)
    assert jnp.allclose(out_i, ref_i, atol=5e-3, rtol=5e-3), "mismatch (f32 identity)"

    print("KERNEL_OK")
</pallas_src>

<mosaic_0001>
module attributes {stable_mosaic.version = 11 : i64} {
  func.func @_residual_block_kernel(%arg0: i32, %arg1: memref<1x16x64xbf16, #tpu.memory_space<vmem>>, %arg2: memref<3x72x128xbf16, #tpu.memory_space<vmem>>, %arg3: memref<1x128xf32, #tpu.memory_space<vmem>>, %arg4: memref<1x128xf32, #tpu.memory_space<vmem>>, %arg5: memref<3x144x128xbf16, #tpu.memory_space<vmem>>, %arg6: memref<1x128xf32, #tpu.memory_space<vmem>>, %arg7: memref<1x128xf32, #tpu.memory_space<vmem>>, %arg8: memref<64x128xbf16, #tpu.memory_space<vmem>>, %arg9: memref<1x16x128xf32, #tpu.memory_space<vmem>>, %arg10: memref<20x72xf32, #tpu.memory_space<vmem>>, %arg11: memref<18x144xf32, #tpu.memory_space<vmem>>) attributes {dimension_semantics = [#tpu.dimension_semantics<parallel>], iteration_bounds = array<i64: 2>, scalar_prefetch = 0 : i64, scratch_operands = 2 : i64, tpu.core_type = #tpu.core_type<tc>, window_params = [{transform_indices = @transform_0, window_bounds = array<i64: 1, 16, 64>}, {pipeline_mode = #tpu.pipeline_mode<synchronous>, transform_indices = @transform_1, window_bounds = array<i64: 3, 72, 128>}, {pipeline_mode = #tpu.pipeline_mode<synchronous>, transform_indices = @transform_2, window_bounds = array<i64: 1, 128>}, {pipeline_mode = #tpu.pipeline_mode<synchronous>, transform_indices = @transform_3, window_bounds = array<i64: 1, 128>}, {pipeline_mode = #tpu.pipeline_mode<synchronous>, transform_indices = @transform_4, window_bounds = array<i64: 3, 144, 128>}, {pipeline_mode = #tpu.pipeline_mode<synchronous>, transform_indices = @transform_5, window_bounds = array<i64: 1, 128>}, {pipeline_mode = #tpu.pipeline_mode<synchronous>, transform_indices = @transform_6, window_bounds = array<i64: 1, 128>}, {pipeline_mode = #tpu.pipeline_mode<synchronous>, transform_indices = @transform_7, window_bounds = array<i64: 64, 128>}, {transform_indices = @transform_8, window_bounds = array<i64: 1, 16, 128>}]} {
    %cst = arith.constant 0.000000e+00 : f32
    %0 = vector.broadcast %cst : f32 to vector<2x72xf32>
    %c0 = arith.constant 0 : index
    %c0_0 = arith.constant 0 : index
    %1 = vector.load %arg10[%c0, %c0_0] : memref<20x72xf32, #tpu.memory_space<vmem>>, vector<2x72xf32>
    tpu.vector_store %arg10[%c0, %c0_0], %0 {strides = array<i32>} : memref<20x72xf32, #tpu.memory_space<vmem>>, vector<2x72xf32>,
    %cst_1 = arith.constant 0.000000e+00 : f32
    %2 = vector.broadcast %cst_1 : f32 to vector<2x72xf32>
    %c18 = arith.constant 18 : index
    %c0_2 = arith.constant 0 : index
    %3 = vector.load %arg10[%c18, %c0_2] : memref<20x72xf32, #tpu.memory_space<vmem>>, vector<2x72xf32>
    tpu.vector_store %arg10[%c18, %c0_2], %2 {strides = array<i32>} : memref<20x72xf32, #tpu.memory_space<vmem>>, vector<2x72xf32>,
    %cst_3 = arith.constant 0.000000e+00 : f32
    %4 = vector.broadcast %cst_3 : f32 to vector<16x4xf32>
    %c2 = arith.constant 2 : index
    %c0_4 = arith.constant 0 : index
    %5 = vector.load %arg10[%c2, %c0_4] : memref<20x72xf32, #tpu.memory_space<vmem>>, vector<16x4xf32>
    tpu.vector_store %arg10[%c2, %c0_4], %4 {strides = array<i32>} : memref<20x72xf32, #tpu.memory_space<vmem>>, vector<16x4xf32>,
    %cst_5 = arith.constant 0.000000e+00 : f32
    %6 = vector.broadcast %cst_5 : f32 to vector<16x4xf32>
    %c2_6 = arith.constant 2 : index
    %c68 = arith.constant 68 : index
    %7 = vector.load %arg10[%c2_6, %c68] : memref<20x72xf32, #tpu.memory_space<vmem>>, vector<16x4xf32>
    tpu.vector_store %arg10[%c2_6, %c68], %6 {strides = array<i32>} : memref<20x72xf32, #tpu.memory_space<vmem>>, vector<16x4xf32>,
    %c0_7 = arith.constant 0 : index
    %c0_8 = arith.constant 0 : index
    %c0_9 = arith.constant 0 : index
    %8 = vector.load %arg1[%c0_7, %c0_8, %c0_9] : memref<1x16x64xbf16, #tpu.memory_space<vmem>>, vector<1x16x64xbf16>
    %9 = vector.shape_cast %8 : vector<1x16x64xbf16> to vector<16x64xbf16>
    %10 = arith.extf %9 : vector<16x64xbf16> to vector<16x64xf32>
    %c2_10 = arith.constant 2 : index
    %c4 = arith.constant 4 : index
    %11 = vector.load %arg10[%c2_10, %c4] : memref<20x72xf32, #tpu.memory_space<vmem>>, vector<16x64xf32>
    tpu.vector_store %arg10[%c2_10, %c4], %10 {strides = array<i32>} : memref<20x72xf32, #tpu.memory_space<vmem>>, vector<16x64xf32>,
    %cst_11 = arith.constant 0.000000e+00 : f32
    %12 = vector.broadcast %cst_11 : f32 to vector<18x8xf32>
    %c0_12 = arith.constant 0 : index
    %c0_13 = arith.constant 0 : index
    %13 = vector.load %arg11[%c0_12, %c0_13] : memref<18x144xf32, #tpu.memory_space<vmem>>, vector<18x8xf32>
    tpu.vector_store %arg11[%c0_12, %c0_13], %12 {strides = array<i32>} : memref<18x144xf32, #tpu.memory_space<vmem>>, vector<18x8xf32>,
    %cst_14 = arith.constant 0.000000e+00 : f32
    %14 = vector.broadcast %cst_14 : f32 to vector<18x8xf32>
    %c0_15 = arith.constant 0 : index
    %c136 = arith.constant 136 : index
    %15 = vector.load %arg11[%c0_15, %c136] : memref<18x144xf32, #tpu.memory_space<vmem>>, vector<18x8xf32>
    tpu.vector_store %arg11[%c0_15, %c136], %14 {strides = array<i32>} : memref<18x144xf32, #tpu.memory_space<vmem>>, vector<18x8xf32>,
    %c0_16 = arith.constant 0 : index
    %c0_17 = arith.constant 0 : index
    %16 = vector.load %arg3[%c0_16, %c0_17] : memref<1x128xf32, #tpu.memory_space<vmem>>, vector<1x128xf32>
    %c0_18 = arith.constant 0 : index
    %c0_19 = arith.constant 0 : index
    %17 = vector.load %arg4[%c0_18, %c0_19] : memref<1x128xf32, #tpu.memory_space<vmem>>, vector<1x128xf32>
    %c0_20 = arith.constant 0 : index
    %c0_21 = arith.constant 0 : index
    %18 = vector.load %arg6[%c0_20, %c0_21] : memref<1x128xf32, #tpu.memory_space<vmem>>, vector<1x128xf32>
    %c0_22 = arith.constant 0 : index
    %c0_23 = arith.constant 0 : index
    %19 = vector.load %arg7[%c0_22, %c0_23] : memref<1x128xf32, #tpu.memory_space<vmem>>, vector<1x128xf32>
    %cst_24 = arith.constant 0.000000e+00 : f32
    %20 = vector.broadcast %cst_24 : f32 to vector<18x128xf32>
    %c0_25 = arith.constant 0 : index
    %c0_26 = arith.constant 0 : index
    %21 = vector.load %arg10[%c0_25, %c0_26] : memref<20x72xf32, #tpu.memory_space<vmem>>, vector<18x72xf32>
    %22 = arith.truncf %21 : vector<18x72xf32> to vector<18x72xbf16>
    %c0_27 = arith.constant 0 : index
    %c0_28 = arith.constant 0 : index
    %c0_29 = arith.constant 0 : index
    %23 = vector.load %arg2[%c0_27, %c0_28, %c0_29] : memref<3x72x128xbf16, #tpu.memory_space<vmem>>, vector<1x72x128xbf16>
    %24 = vector.shape_cast %23 : vector<1x72x128xbf16> to vector<72x128xbf16>
    %cst_30 = arith.constant dense<0.000000e+00> : vector<18x128xf32>
    %25 = tpu.matmul %22, %24, %cst_30 {dimension_numbers = #tpu.dot_dimension_numbers<[1], [0], [0], [1], [0, 0, 1, 1], [], []>} : vector<18x72xbf16>, vector<72x128xbf16>, vector<18x128xf32> -> vector<18x128xf32>
    %26 = arith.addf %20, %25 : vector<18x128xf32>
    %c1 = arith.constant 1 : index
    %c0_31 = arith.constant 0 : index
    %27 = vector.load %arg10[%c1, %c0_31] : memref<20x72xf32, #tpu.memory_space<vmem>>, vector<18x72xf32>
    %28 = arith.truncf %27 : vector<18x72xf32> to vector<18x72xbf16>
    %c1_32 = arith.constant 1 : index
    %c0_33 = arith.constant 0 : index
    %c0_34 = arith.constant 0 : index
    %29 = vector.load %arg2[%c1_32, %c0_33, %c0_34] : memref<3x72x128xbf16, #tpu.memory_space<vmem>>, vector<1x72x128xbf16>
    %30 = vector.shape_cast %29 : vector<1x72x128xbf16> to vector<72x128xbf16>
    %cst_35 = arith.constant dense<0.000000e+00> : vector<18x128xf32>
    %31 = tpu.matmul %28, %30, %cst_35 {dimension_numbers = #tpu.dot_dimension_numbers<[1], [0], [0], [1], [0, 0, 1, 1], [], []>} : vector<18x72xbf16>, vector<72x128xbf16>, vector<18x128xf32> -> vector<18x128xf32>
    %32 = arith.addf %26, %31 : vector<18x128xf32>
    %c2_36 = arith.constant 2 : index
    %c0_37 = arith.constant 0 : index
    %33 = vector.load %arg10[%c2_36, %c0_37] : memref<20x72xf32, #tpu.memory_space<vmem>>, vector<18x72xf32>
    %34 = arith.truncf %33 : vector<18x72xf32> to vector<18x72xbf16>
    %c2_38 = arith.constant 2 : index
    %c0_39 = arith.constant 0 : index
    %c0_40 = arith.constant 0 : index
    %35 = vector.load %arg2[%c2_38, %c0_39, %c0_40] : memref<3x72x128xbf16, #tpu.memory_space<vmem>>, vector<1x72x128xbf16>
    %36 = vector.shape_cast %35 : vector<1x72x128xbf16> to vector<72x128xbf16>
    %cst_41 = arith.constant dense<0.000000e+00> : vector<18x128xf32>
    %37 = tpu.matmul %34, %36, %cst_41 {dimension_numbers = #tpu.dot_dimension_numbers<[1], [0], [0], [1], [0, 0, 1, 1], [], []>} : vector<18x72xbf16>, vector<72x128xbf16>, vector<18x128xf32> -> vector<18x128xf32>
    %38 = arith.addf %32, %37 : vector<18x128xf32>
    %39 = vector.broadcast %16 : vector<1x128xf32> to vector<18x128xf32>
    %40 = arith.mulf %38, %39 : vector<18x128xf32>
    %41 = vector.broadcast %17 : vector<1x128xf32> to vector<18x128xf32>
    %42 = arith.addf %40, %41 : vector<18x128xf32>
    %cst_42 = arith.constant 0.000000e+00 : f32
    %43 = vector.broadcast %cst_42 : f32 to vector<18x128xf32>
    %44 = arith.maximumf %42, %43 : vector<18x128xf32>
    %45 = tpu.iota {dimensions = array<i32: 0>} : vector<18x1xi32>
    %c-1_i32 = arith.constant -1 : i32
    %46 = vector.broadcast %c-1_i32 : i32 to vector<18x1xi32>
    %47 = arith.addi %46, %45 : vector<18x1xi32>
    %c0_i32 = arith.constant 0 : i32
    %48 = vector.broadcast %c0_i32 : i32 to vector<18x1xi32>
    %49 = arith.cmpi sge, %47, %48 : vector<18x1xi32>
    %c16_i32 = arith.constant 16 : i32
    %50 = vector.broadcast %c16_i32 : i32 to vector<18x1xi32>
    %51 = arith.cmpi slt, %47, %50 : vector<18x1xi32>
    %52 = arith.andi %49, %51 : vector<18x1xi1>
    %cst_43 = arith.constant 0.000000e+00 : f32
    %53 = vector.shape_cast %52 : vector<18x1xi1> to vector<18x1xi1>
    %54 = vector.broadcast %53 : vector<18x1xi1> to vector<18x128xi1>
    %55 = vector.broadcast %cst_43 : f32 to vector<18x128xf32>
    %56 = arith.select %54, %44, %55 : vector<18x128xi1>, vector<18x128xf32>
    %c0_44 = arith.constant 0 : index
    %c8 = arith.constant 8 : index
    %57 = vector.load %arg11[%c0_44, %c8] : memref<18x144xf32, #tpu.memory_space<vmem>>, vector<18x128xf32>
    tpu.vector_store %arg11[%c0_44, %c8], %56 {strides = array<i32>} : memref<18x144xf32, #tpu.memory_space<vmem>>, vector<18x128xf32>,
    %cst_45 = arith.constant 0.000000e+00 : f32
    %58 = vector.broadcast %cst_45 : f32 to vector<16x128xf32>
    %c0_46 = arith.constant 0 : index
    %c0_47 = arith.constant 0 : index
    %59 = vector.load %arg11[%c0_46, %c0_47] : memref<18x144xf32, #tpu.memory_space<vmem>>, vector<16x144xf32>
    %60 = arith.truncf %59 : vector<16x144xf32> to vector<16x144xbf16>
    %c0_48 = arith.constant 0 : index
    %c0_49 = arith.constant 0 : index
    %c0_50 = arith.constant 0 : index
    %61 = vector.load %arg5[%c0_48, %c0_49, %c0_50] : memref<3x144x128xbf16, #tpu.memory_space<vmem>>, vector<1x144x128xbf16>
    %62 = vector.shape_cast %61 : vector<1x144x128xbf16> to vector<144x128xbf16>
    %cst_51 = arith.constant dense<0.000000e+00> : vector<16x128xf32>
    %63 = tpu.matmul %60, %62, %cst_51 {dimension_numbers = #tpu.dot_dimension_numbers<[1], [0], [0], [1], [0, 0, 1, 1], [], []>} : vector<16x144xbf16>, vector<144x128xbf16>, vector<16x128xf32> -> vector<16x128xf32>
    %64 = arith.addf %58, %63 : vector<16x128xf32>
    %c1_52 = arith.constant 1 : index
    %c0_53 = arith.constant 0 : index
    %65 = vector.load %arg11[%c1_52, %c0_53] : memref<18x144xf32, #tpu.memory_space<vmem>>, vector<16x144xf32>
    %66 = arith.truncf %65 : vector<16x144xf32> to vector<16x144xbf16>
    %c1_54 = arith.constant 1 : index
    %c0_55 = arith.constant 0 : index
    %c0_56 = arith.constant 0 : index
    %67 = vector.load %arg5[%c1_54, %c0_55, %c0_56] : memref<3x144x128xbf16, #tpu.memory_space<vmem>>, vector<1x144x128xbf16>
    %68 = vector.shape_cast %67 : vector<1x144x128xbf16> to vector<144x128xbf16>
    %cst_57 = arith.constant dense<0.000000e+00> : vector<16x128xf32>
    %69 = tpu.matmul %66, %68, %cst_57 {dimension_numbers = #tpu.dot_dimension_numbers<[1], [0], [0], [1], [0, 0, 1, 1], [], []>} : vector<16x144xbf16>, vector<144x128xbf16>, vector<16x128xf32> -> vector<16x128xf32>
    %70 = arith.addf %64, %69 : vector<16x128xf32>
    %c2_58 = arith.constant 2 : index
    %c0_59 = arith.constant 0 : index
    %71 = vector.load %arg11[%c2_58, %c0_59] : memref<18x144xf32, #tpu.memory_space<vmem>>, vector<16x144xf32>
    %72 = arith.truncf %71 : vector<16x144xf32> to vector<16x144xbf16>
    %c2_60 = arith.constant 2 : index
    %c0_61 = arith.constant 0 : index
    %c0_62 = arith.constant 0 : index
    %73 = vector.load %arg5[%c2_60, %c0_61, %c0_62] : memref<3x144x128xbf16, #tpu.memory_space<vmem>>, vector<1x144x128xbf16>
    %74 = vector.shape_cast %73 : vector<1x144x128xbf16> to vector<144x128xbf16>
    %cst_63 = arith.constant dense<0.000000e+00> : vector<16x128xf32>
    %75 = tpu.matmul %72, %74, %cst_63 {dimension_numbers = #tpu.dot_dimension_numbers<[1], [0], [0], [1], [0, 0, 1, 1], [], []>} : vector<16x144xbf16>, vector<144x128xbf16>, vector<16x128xf32> -> vector<16x128xf32>
    %76 = arith.addf %70, %75 : vector<16x128xf32>
    %77 = vector.broadcast %18 : vector<1x128xf32> to vector<16x128xf32>
    %78 = arith.mulf %76, %77 : vector<16x128xf32>
    %79 = vector.broadcast %19 : vector<1x128xf32> to vector<16x128xf32>
    %80 = arith.addf %78, %79 : vector<16x128xf32>
    %c2_64 = arith.constant 2 : index
    %c4_65 = arith.constant 4 : index
    %81 = vector.load %arg10[%c2_64, %c4_65] : memref<20x72xf32, #tpu.memory_space<vmem>>, vector<16x64xf32>
    %82 = arith.truncf %81 : vector<16x64xf32> to vector<16x64xbf16>
    %c0_66 = arith.constant 0 : index
    %c0_67 = arith.constant 0 : index
    %83 = vector.load %arg8[%c0_66, %c0_67] : memref<64x128xbf16, #tpu.memory_space<vmem>>, vector<64x128xbf16>
    %cst_68 = arith.constant dense<0.000000e+00> : vector<16x128xf32>
    %84 = tpu.matmul %82, %83, %cst_68 {dimension_numbers = #tpu.dot_dimension_numbers<[1], [0], [0], [1], [0, 0, 1, 1], [], []>} : vector<16x64xbf16>, vector<64x128xbf16>, vector<16x128xf32> -> vector<16x128xf32>
    %85 = arith.addf %80, %84 : vector<16x128xf32>
    %c0_69 = arith.constant 0 : index
    %c0_70 = arith.constant 0 : index
    %c0_71 = arith.constant 0 : index
    %86 = vector.load %arg9[%c0_69, %c0_70, %c0_71] : memref<1x16x128xf32, #tpu.memory_space<vmem>>, vector<1x16x128xf32>
    %87 = vector.shape_cast %86 : vector<1x16x128xf32> to vector<16x128xf32>
    %88 = vector.shape_cast %85 : vector<16x128xf32> to vector<1x16x128xf32>
    tpu.vector_store %arg9[%c0_69, %c0_70, %c0_71], %88 {strides = array<i32>} : memref<1x16x128xf32, #tpu.memory_space<vmem>>, vector<1x16x128xf32>,
    return
  }
  func.func @transform_0(%arg0: i32) -> (i32, i32, i32) {
    %c0_i32 = arith.constant 0 : i32
    %c0_i32_0 = arith.constant 0 : i32
    %c0_i32_1 = arith.constant 0 : i32
    return %arg0, %c0_i32, %c0_i32_0 : i32, i32, i32
  }
  func.func @transform_1(%arg0: i32) -> (i32, i32, i32) {
    %c0_i32 = arith.constant 0 : i32
    %c0_i32_0 = arith.constant 0 : i32
    %c0_i32_1 = arith.constant 0 : i32
    %c0_i32_2 = arith.constant 0 : i32
    return %c0_i32, %c0_i32_0, %c0_i32_1 : i32, i32, i32
  }
  func.func @transform_2(%arg0: i32) -> (i32, i32) {
    %c0_i32 = arith.constant 0 : i32
    %c0_i32_0 = arith.constant 0 : i32
    %c0_i32_1 = arith.constant 0 : i32
    return %c0_i32, %c0_i32_0 : i32, i32
  }
  func.func @transform_3(%arg0: i32) -> (i32, i32) {
    %c0_i32 = arith.constant 0 : i32
    %c0_i32_0 = arith.constant 0 : i32
    %c0_i32_1 = arith.constant 0 : i32
    return %c0_i32, %c0_i32_0 : i32, i32
  }
  func.func @transform_4(%arg0: i32) -> (i32, i32, i32) {
    %c0_i32 = arith.constant 0 : i32
    %c0_i32_0 = arith.constant 0 : i32
    %c0_i32_1 = arith.constant 0 : i32
    %c0_i32_2 = arith.constant 0 : i32
    return %c0_i32, %c0_i32_0, %c0_i32_1 : i32, i32, i32
  }
  func.func @transform_5(%arg0: i32) -> (i32, i32) {
    %c0_i32 = arith.constant 0 : i32
    %c0_i32_0 = arith.constant 0 : i32
    %c0_i32_1 = arith.constant 0 : i32
    return %c0_i32, %c0_i32_0 : i32, i32
  }
  func.func @transform_6(%arg0: i32) -> (i32, i32) {
    %c0_i32 = arith.constant 0 : i32
    %c0_i32_0 = arith.constant 0 : i32
    %c0_i32_1 = arith.constant 0 : i32
    return %c0_i32, %c0_i32_0 : i32, i32
  }
  func.func @transform_7(%arg0: i32) -> (i32, i32) {
    %c0_i32 = arith.constant 0 : i32
    %c0_i32_0 = arith.constant 0 : i32
    %c0_i32_1 = arith.constant 0 : i32
    return %c0_i32, %c0_i32_0 : i32, i32
  }
  func.func @transform_8(%arg0: i32) -> (i32, i32, i32) {
    %c0_i32 = arith.constant 0 : i32
    %c0_i32_0 = arith.constant 0 : i32
    %c0_i32_1 = arith.constant 0 : i32
    return %arg0, %c0_i32, %c0_i32_0 : i32, i32, i32
  }
}

</mosaic_0001>

<llo_original>
// kernel: tpu_custom_call.1
$region0: #{tpu_custom_call.1}
  #allocation0 [shape = 'u32[]', space=smem, size = 0x4, offset = 0x4, fixed_abs, tag = 'smem constant byte address 0x4 - core index']
  #allocation1 [shape = 'u32[144,128]{1,0:T(1,128)}', space=vmem, size = 0x12000, scoped, tag = 'internal scratch']
  #allocation2 [shape = 'f32[20,72]{1,0:T(8,128)}', space=vmem, size = 0x3000, scoped, tag = 'scratch operand']
  #allocation3 [shape = 'f32[18,144]{1,0:T(8,128)}', space=vmem, size = 0x6000, scoped, tag = 'scratch operand']
  %s0 = inlined_call_operand.hbm [shape: bf16[2,16,64], index: 0, kind: input, shape index: {}]
  %s1 = inlined_call_operand.hbm [shape: bf16[3,72,128], index: 1, kind: input, shape index: {}]
  %s2 = inlined_call_operand.vmem [shape: f32[1,128], index: 2, kind: input, shape index: {}]
  %s3 = inlined_call_operand.vmem [shape: f32[1,128], index: 3, kind: input, shape index: {}]
  %s4 = inlined_call_operand.hbm [shape: bf16[3,144,128], index: 4, kind: input, shape index: {}]
  %s5 = inlined_call_operand.vmem [shape: f32[1,128], index: 5, kind: input, shape index: {}]
  %s6 = inlined_call_operand.vmem [shape: f32[1,128], index: 6, kind: input, shape index: {}]
  %s7 = inlined_call_operand.hbm [shape: bf16[64,128], index: 7, kind: input, shape index: {}]
  %s8 = inlined_call_operand.hbm [shape: f32[2,16,128], index: 8, kind: output, shape index: {}]
  %s9 = sld [smem:[#allocation0]]
  $region81: #{tpu_custom_call.1} parent=0
    _
  %s11 = ssub.s32 1, %s9
  %s12 = scalar_select 0, %s11, %s9
  $region1: #{tpu_custom_call.1} parent=0
    #allocation4 [shape = 'u8[8192]{0}', space=vmem, size = 0x2000, scoped, tag = 'input window, operand 0']
    #allocation5 [shape = 's32[2]{0}', space=sflag, size = 0x8, scoped, tag = 'scoped memory for tpu_custom_call.1']
    #allocation6 [shape = 's32[2]{0}', space=sflag, size = 0x8, scoped, tag = 'scoped memory for tpu_custom_call.1']
    #allocation7 [shape = 'u8[55296]{0}', space=vmem, size = 0xd800, scoped, tag = 'input window, operand 1, single buffered']
    #allocation8 [shape = 's32[1]{0}', space=sflag, size = 0x4, scoped, tag = 'scoped memory for tpu_custom_call.1']
    #allocation9 [shape = 'u8[110592]{0}', space=vmem, size = 0x1b000, scoped, tag = 'input window, operand 4, single buffered']
    #allocation10 [shape = 'u8[16384]{0}', space=vmem, size = 0x4000, scoped, tag = 'input window, operand 7, single buffered']
    #allocation11 [shape = 's32[1]{0}', space=sflag, size = 0x4, scoped, tag = 'scoped memory for tpu_custom_call.1']
    #allocation12 [shape = 'u8[16384]{0}', space=vmem, size = 0x4000, scoped, tag = 'output window, operand 0']
    %13 = vsyncpa [#allocation5], 0
    %s14 = scalar_lea.sflag [#allocation5], 1
    %15 = vsyncpa %s14, 0
    %16 = vsyncpa [#allocation8], 0
    %17 = vsyncpa [#allocation11], 0
    %18 = vsyncpa [#allocation6], 0
    %s19 = scalar_lea.sflag [#allocation6], 1
    %20 = vsyncpa %s19, 0
    loop: start=0, step=1, limit=4
    $region2: #{tpu_custom_call.1} parent=1 // loop_pre_header
      _
    $region3: #{tpu_custom_call.1} parent=1 // loop_header
      %s22 = sphi 0, %s26
      %p23 = scmp.ge.s32.totalorder %s22, 4
      %s32 = sphi 0, %s34
      %s35 = sphi 0, %s32
      %s36 = sphi 0, %s35
      %s52 = sphi 0, %s36
      %s56 = sphi 0, %s56
      %s58 = sphi 0, %s56
      %s59 = sphi 0, %s58
      %s73 = sphi 0, %s59
      %s77 = sphi 0, %s77
      %s79 = sphi 0, %s77
      %s80 = sphi 0, %s79
      %s94 = sphi 0, %s80
      %s98 = sphi 0, %s98
      %s100 = sphi 0, %s98
      %s101 = sphi 0, %s100
      %s115 = sphi 0, %s101
      %s119 = sphi 0, %s119
      %s121 = sphi 0, %s119
      %s122 = sphi 0, %s121
      %s136 = sphi 0, %s122
      %s140 = sphi 0, %s140
      %s142 = sphi 0, %s140
      %s143 = sphi 0, %s142
      %s157 = sphi 0, %s143
      %s161 = sphi 0, %s161
      %s163 = sphi 0, %s161
      %s164 = sphi 0, %s163
      %s178 = sphi 0, %s164
      %s182 = sphi 0, %s182
      %s184 = sphi 0, %s182
      %s185 = sphi 0, %s184
      %s199 = sphi 0, %s185
      %s205 = sphi 0, %s207
      %s208 = sphi 0, %s205
      %s209 = sphi 0, %s208
      %s225 = sphi 0, %s209
    $region4: #{tpu_custom_call.1} parent=1 // loop_header_branch
      %25 = sbr.rel (%p23) target = $region8
    $region5: #{tpu_custom_call.1} parent=1 // loop_body
      %s27 = ssub.s32 %s22, 1
      %s28 = ssub.s32 %s22, 2
      %s29 = sadd.s32 %s22, 1
      %s30 = ssub.s32 %s22, %s29
      %p31 = scmp.eq.s32.totalorder %s30, 0
      %s33 = sadd.s32 %s32, 1
      %s34 = scalar_select %p31, %s32, %s33
      %p37 = pneg %p31
      %p38 = scmp.eq.s32.totalorder %s22, 1
      %p39 = por %p37, %p38
      %p40 = scmp.ne.s32.totalorder %s32, %s35
      %p41 = scmp.eq.s32.totalorder %s22, 0
      %p42 = por %p40, %p41
      %p43 = scmp.ne.s32.totalorder %s32, %s35
      %p44 = scmp.eq.s32.totalorder %s27, 1
      %p45 = por %p43, %p44
      %p46 = scmp.ne.s32.totalorder %s35, %s36
      %p47 = scmp.eq.s32.totalorder %s27, 0
      %p48 = por %p46, %p47
      %p49 = scmp.ne.s32.totalorder %s35, %s36
      %p50 = scmp.eq.s32.totalorder %s28, 1
      %p51 = por %p49, %p50
      %p53 = scmp.ne.s32.totalorder %s36, %s52
      %p54 = scmp.eq.s32.totalorder %s28, 0
      %p55 = por %p53, %p54
      %s57 = sadd.s32 %s56, 1
      %p60 = scmp.eq.s32.totalorder %s22, 1
      %p61 = scmp.ne.s32.totalorder %s56, %s58
      %p62 = scmp.eq.s32.totalorder %s22, 0
      %p63 = por %p61, %p62
      %p64 = scmp.ne.s32.totalorder %s56, %s58
      %p65 = scmp.eq.s32.totalorder %s27, 1
      %p66 = por %p64, %p65
      %p67 = scmp.ne.s32.totalorder %s58, %s59
      %p68 = scmp.eq.s32.totalorder %s27, 0
      %p69 = por %p67, %p68
      %p70 = scmp.ne.s32.totalorder %s58, %s59
      %p71 = scmp.eq.s32.totalorder %s28, 1
      %p72 = por %p70, %p71
      %p74 = scmp.ne.s32.totalorder %s59, %s73
      %p75 = scmp.eq.s32.totalorder %s28, 0
      %p76 = por %p74, %p75
      %s78 = sadd.s32 %s77, 1
      %p81 = scmp.eq.s32.totalorder %s22, 1
      %p82 = scmp.ne.s32.totalorder %s77, %s79
      %p83 = scmp.eq.s32.totalorder %s22, 0
      %p84 = por %p82, %p83
      %p85 = scmp.ne.s32.totalorder %s77, %s79
      %p86 = scmp.eq.s32.totalorder %s27, 1
      %p87 = por %p85, %p86
      %p88 = scmp.ne.s32.totalorder %s79, %s80
      %p89 = scmp.eq.s32.totalorder %s27, 0
      %p90 = por %p88, %p89
      %p91 = scmp.ne.s32.totalorder %s79, %s80
      %p92 = scmp.eq.s32.totalorder %s28, 1
      %p93 = por %p91, %p92
      %p95 = scmp.ne.s32.totalorder %s80, %s94
      %p96 = scmp.eq.s32.totalorder %s28, 0
      %p97 = por %p95, %p96
      %s99 = sadd.s32 %s98, 1
      %p102 = scmp.eq.s32.totalorder %s22, 1
      %p103 = scmp.ne.s32.totalorder %s98, %s100
      %p104 = scmp.eq.s32.totalorder %s22, 0
      %p105 = por %p103, %p104
      %p106 = scmp.ne.s32.totalorder %s98, %s100
      %p107 = scmp.eq.s32.totalorder %s27, 1
      %p108 = por %p106, %p107
      %p109 = scmp.ne.s32.totalorder %s100, %s101
      %p110 = scmp.eq.s32.totalorder %s27, 0
      %p111 = por %p109, %p110
      %p112 = scmp.ne.s32.totalorder %s100, %s101
      %p113 = scmp.eq.s32.totalorder %s28, 1
      %p114 = por %p112, %p113
      %p116 = scmp.ne.s32.totalorder %s101, %s115
      %p117 = scmp.eq.s32.totalorder %s28, 0
      %p118 = por %p116, %p117
      %s120 = sadd.s32 %s119, 1
      %p123 = scmp.eq.s32.totalorder %s22, 1
      %p124 = scmp.ne.s32.totalorder %s119, %s121
      %p125 = scmp.eq.s32.totalorder %s22, 0
      %p126 = por %p124, %p125
      %p127 = scmp.ne.s32.totalorder %s119, %s121
      %p128 = scmp.eq.s32.totalorder %s27, 1
      %p129 = por %p127, %p128
      %p130 = scmp.ne.s32.totalorder %s121, %s122
      %p131 = scmp.eq.s32.totalorder %s27, 0
      %p132 = por %p130, %p131
      %p133 = scmp.ne.s32.totalorder %s121, %s122
      %p134 = scmp.eq.s32.totalorder %s28, 1
      %p135 = por %p133, %p134
      %p137 = scmp.ne.s32.totalorder %s122, %s136
      %p138 = scmp.eq.s32.totalorder %s28, 0
      %p139 = por %p137, %p138
      %s141 = sadd.s32 %s140, 1
      %p144 = scmp.eq.s32.totalorder %s22, 1
      %p145 = scmp.ne.s32.totalorder %s140, %s142
      %p146 = scmp.eq.s32.totalorder %s22, 0
      %p147 = por %p145, %p146
      %p148 = scmp.ne.s32.totalorder %s140, %s142
      %p149 = scmp.eq.s32.totalorder %s27, 1
      %p150 = por %p148, %p149
      %p151 = scmp.ne.s32.totalorder %s142, %s143
      %p152 = scmp.eq.s32.totalorder %s27, 0
      %p153 = por %p151, %p152
      %p154 = scmp.ne.s32.totalorder %s142, %s143
      %p155 = scmp.eq.s32.totalorder %s28, 1
      %p156 = por %p154, %p155
      %p158 = scmp.ne.s32.totalorder %s143, %s157
      %p159 = scmp.eq.s32.totalorder %s28, 0
      %p160 = por %p158, %p159
      %s162 = sadd.s32 %s161, 1
      %p165 = scmp.eq.s32.totalorder %s22, 1
      %p166 = scmp.ne.s32.totalorder %s161, %s163
      %p167 = scmp.eq.s32.totalorder %s22, 0
      %p168 = por %p166, %p167
      %p169 = scmp.ne.s32.totalorder %s161, %s163
      %p170 = scmp.eq.s32.totalorder %s27, 1
      %p171 = por %p169, %p170
      %p172 = scmp.ne.s32.totalorder %s163, %s164
      %p173 = scmp.eq.s32.totalorder %s27, 0
      %p174 = por %p172, %p173
      %p175 = scmp.ne.s32.totalorder %s163, %s164
      %p176 = scmp.eq.s32.totalorder %s28, 1
      %p177 = por %p175, %p176
      %p179 = scmp.ne.s32.totalorder %s164, %s178
      %p180 = scmp.eq.s32.totalorder %s28, 0
      %p181 = por %p179, %p180
      %s183 = sadd.s32 %s182, 1
      %p186 = scmp.eq.s32.totalorder %s22, 1
      %p187 = scmp.ne.s32.totalorder %s182, %s184
      %p188 = scmp.eq.s32.totalorder %s22, 0
      %p189 = por %p187, %p188
      %p190 = scmp.ne.s32.totalorder %s182, %s184
      %p191 = scmp.eq.s32.totalorder %s27, 1
      %p192 = por %p190, %p191
      %p193 = scmp.ne.s32.totalorder %s184, %s185
      %p194 = scmp.eq.s32.totalorder %s27, 0
      %p195 = por %p193, %p194
      %p196 = scmp.ne.s32.totalorder %s184, %s185
      %p197 = scmp.eq.s32.totalorder %s28, 1
      %p198 = por %p196, %p197
      %p200 = scmp.ne.s32.totalorder %s185, %s199
      %p201 = scmp.eq.s32.totalorder %s28, 0
      %p202 = por %p200, %p201
      %s203 = ssub.s32 %s22, %s29
      %p204 = scmp.eq.s32.totalorder %s203, 0
      %s206 = sadd.s32 %s205, 1
      %s207 = scalar_select %p204, %s205, %s206
      %p210 = pneg %p204
      %p211 = scmp.eq.s32.totalorder %s22, 1
      %p212 = por %p210, %p211
      %p213 = scmp.ne.s32.totalorder %s205, %s208
      %p214 = scmp.eq.s32.totalorder %s22, 0
      %p215 = por %p213, %p214
      %p216 = scmp.ne.s32.totalorder %s205, %s208
      %p217 = scmp.eq.s32.totalorder %s27, 1
      %p218 = por %p216, %p217
      %p219 = scmp.ne.s32.totalorder %s208, %s209
      %p220 = scmp.eq.s32.totalorder %s27, 0
      %p221 = por %p219, %p220
      %p222 = scmp.ne.s32.totalorder %s208, %s209
      %p223 = scmp.eq.s32.totalorder %s28, 1
      %p224 = por %p222, %p223
      %p226 = scmp.ne.s32.totalorder %s209, %s225
      %p227 = scmp.eq.s32.totalorder %s28, 0
      %p228 = por %p226, %p227
      %p229 = scmp.le.s32.totalorder 1, %s22
      %p230 = scmp.lt.s32.totalorder %s22, 3
      %p231 = pnand %p229, %p230
      %p232 = pneg %p231
      // Predicated region
      $region9: #{tpu_custom_call.1} parent=5 // pred_check
        _
      $region10: #{tpu_custom_call.1} parent=5 // pred_check_branch
        %234 = sbr.rel (%p231) target = $region12
      $region11: #{tpu_custom_call.1} parent=5 // pred_region
        %s235 = ssub.s32 %s22, 1
        // Predicated region
        $region13: #{tpu_custom_call.1} parent=11 // pred_check
          %p236 = pneg %p69
        $region14: #{tpu_custom_call.1} parent=11 // pred_check_branch
          %238 = sbr.rel (%p236) target = $region16
        $region15: #{tpu_custom_call.1} parent=11 // pred_region
          %s240 = ssub.s32 1728, 1728
          %241 = vsyncadd [#allocation8], %s240
          %s242 = sshll.u32 [#allocation7], 4
          %s243 = int_to_ptr.vmem [resolvable:$true] %s242
          %248 = dma.hbm_to_vmem [thread:$0]  %s1, 1728, %s243, [#allocation8], 64, 64, 4
        $region16: #{tpu_custom_call.1} parent=11 // pred_fallthru
          _
        // Predicated region
        $region17: #{tpu_custom_call.1} parent=11 // pred_check
          %p249 = pneg %p90
        $region18: #{tpu_custom_call.1} parent=11 // pred_check_branch
          %251 = sbr.rel (%p249) target = $region20
        $region19: #{tpu_custom_call.1} parent=11 // pred_region
          _
        $region20: #{tpu_custom_call.1} parent=11 // pred_fallthru
          _
        // Predicated region
        $region21: #{tpu_custom_call.1} parent=11 // pred_check
          %p252 = pneg %p111
        $region22: #{tpu_custom_call.1} parent=11 // pred_check_branch
          %254 = sbr.rel (%p252) target = $region24
        $region23: #{tpu_custom_call.1} parent=11 // pred_region
          _
        $region24: #{tpu_custom_call.1} parent=11 // pred_fallthru
          _
        // Predicated region
        $region25: #{tpu_custom_call.1} parent=11 // pred_check
          %p255 = pneg %p132
        $region26: #{tpu_custom_call.1} parent=11 // pred_check_branch
          %257 = sbr.rel (%p255) target = $region28
        $region27: #{tpu_custom_call.1} parent=11 // pred_region
          %s259 = ssub.s32 3456, 3456
          %260 = vsyncadd [#allocation8], %s259
          %s261 = sshll.u32 [#allocation9], 4
          %s262 = int_to_ptr.vmem [resolvable:$true] %s261
          %267 = dma.hbm_to_vmem [thread:$0]  %s4, 3456, %s262, [#allocation8], 64, 64, 4
        $region28: #{tpu_custom_call.1} parent=11 // pred_fallthru
          _
        // Predicated region
        $region29: #{tpu_custom_call.1} parent=11 // pred_check
          %p268 = pneg %p153
        $region30: #{tpu_custom_call.1} parent=11 // pred_check_branch
          %270 = sbr.rel (%p268) target = $region32
        $region31: #{tpu_custom_call.1} parent=11 // pred_region
          _
        $region32: #{tpu_custom_call.1} parent=11 // pred_fallthru
          _
        // Predicated region
        $region33: #{tpu_custom_call.1} parent=11 // pred_check
          %p271 = pneg %p174
        $region34: #{tpu_custom_call.1} parent=11 // pred_check_branch
          %273 = sbr.rel (%p271) target = $region36
        $region35: #{tpu_custom_call.1} parent=11 // pred_region
          _
        $region36: #{tpu_custom_call.1} parent=11 // pred_fallthru
          _
        // Predicated region
        $region37: #{tpu_custom_call.1} parent=11 // pred_check
          %p274 = pneg %p195
        $region38: #{tpu_custom_call.1} parent=11 // pred_check_branch
          %276 = sbr.rel (%p274) target = $region40
        $region39: #{tpu_custom_call.1} parent=11 // pred_region
          %s278 = ssub.s32 512, 512
          %279 = vsyncadd [#allocation11], %s278
          %s280 = sshll.u32 [#allocation10], 4
          %s281 = int_to_ptr.vmem [resolvable:$true] %s280
          %286 = dma.hbm_to_vmem [thread:$0]  %s7, 512, %s281, [#allocation11], 64, 64, 4
        $region40: #{tpu_custom_call.1} parent=11 // pred_fallthru
          _
      $region12: #{tpu_custom_call.1} parent=5 // pred_fallthru
        _
      %p287 = scmp.lt.s32.totalorder %s22, 2
      // Predicated region
      $region41: #{tpu_custom_call.1} parent=5 // pred_check
        %p288 = pneg %p287
      $region42: #{tpu_custom_call.1} parent=5 // pred_check_branch
        %290 = sbr.rel (%p288) target = $region44
      $region43: #{tpu_custom_call.1} parent=5 // pred_region
        // Predicated region
        $region45: #{tpu_custom_call.1} parent=43 // pred_check
          %p291 = pneg %p42
        $region46: #{tpu_custom_call.1} parent=43 // pred_check_branch
          %293 = sbr.rel (%p291) target = $region48
        $region47: #{tpu_custom_call.1} parent=43 // pred_region
          %s294 = sand.u32 %s32, 1
          %s295 = scalar_lea.sflag [#allocation5], %s294
          %s296 = sand.u32 %s32, 1
          %s297 = smul.addr %s296, 8
          %s298 = scalar_lea.vmem [#allocation4], %s297
          %s300 = ssub.s32 128, 128
          %301 = vsyncadd %s295, %s300
          %s302 = smul.addr %s22, 2
          %s303 = smul.addr %s302, 64
          %s304 = scalar_lea.hbm %s0, %s303
          %s305 = sshll.u32 %s298, 4
          %s306 = int_to_ptr.vmem [resolvable:$true] %s305
          %311 = dma.hbm_to_vmem [thread:$0]  %s304, 128, %s306, %s295, 64, 64, 4
        $region48: #{tpu_custom_call.1} parent=43 // pred_fallthru
          _
      $region44: #{tpu_custom_call.1} parent=5 // pred_fallthru
        _
      %p312 = scmp.le.s32.totalorder 1, %s22
      %p313 = scmp.lt.s32.totalorder %s22, 3
      %p314 = pnand %p312, %p313
      %p315 = pneg %p314
      // Predicated region
      $region49: #{tpu_custom_call.1} parent=5 // pred_check
        _
      $region50: #{tpu_custom_call.1} parent=5 // pred_check_branch
        %317 = sbr.rel (%p314) target = $region52
      $region51: #{tpu_custom_call.1} parent=5 // pred_region
        %s318 = ssub.s32 %s22, 1
        %s319 = sand.u32 %s35, 1
        %s320 = scalar_lea.sflag [#allocation5], %s319
        %s321 = sand.u32 %s35, 1
        %s322 = smul.addr %s321, 8
        %s323 = scalar_lea.vmem [#allocation4], %s322
        // Predicated region
        $region53: #{tpu_custom_call.1} parent=51 // pred_check
          %p324 = pneg %p48
        $region54: #{tpu_custom_call.1} parent=51 // pred_check_branch
          %326 = sbr.rel (%p324) target = $region56
        $region55: #{tpu_custom_call.1} parent=51 // pred_region
          %327 = dma.done %s320, 128
        $region56: #{tpu_custom_call.1} parent=51 // pred_fallthru
          _
        // Predicated region
        $region57: #{tpu_custom_call.1} parent=51 // pred_check
          %p328 = pneg %p69
        $region58: #{tpu_custom_call.1} parent=51 // pred_check_branch
          %330 = sbr.rel (%p328) target = $region60
        $region59: #{tpu_custom_call.1} parent=51 // pred_region
          %331 = dma.done [#allocation8], 1728
        $region60: #{tpu_custom_call.1} parent=51 // pred_fallthru
          _
        // Predicated region
        $region61: #{tpu_custom_call.1} parent=51 // pred_check
          %p332 = pneg %p132
        $region62: #{tpu_custom_call.1} parent=51 // pred_check_branch
          %334 = sbr.rel (%p332) target = $region64
        $region63: #{tpu_custom_call.1} parent=51 // pred_region
          %335 = dma.done [#allocation8], 3456
        $region64: #{tpu_custom_call.1} parent=51 // pred_fallthru
          _
        // Predicated region
        $region65: #{tpu_custom_call.1} parent=51 // pred_check
          %p336 = pneg %p195
        $region66: #{tpu_custom_call.1} parent=51 // pred_check_branch
          %338 = sbr.rel (%p336) target = $region68
        $region67: #{tpu_custom_call.1} parent=51 // pred_region
          %339 = dma.done [#allocation11], 512
        $region68: #{tpu_custom_call.1} parent=51 // pred_fallthru
          _
        %s340 = sand.u32 %s35, 1
        %s341 = scalar_lea.sflag [#allocation5], %s340
        %s342 = sand.u32 %s35, 1
        %s343 = smul.addr %s342, 8
        %s344 = scalar_lea.vmem [#allocation4], %s343
        %p345 = pneg %p48
        %p346 = pneg %p45
        %p347 = pneg %p69
        %p348 = pneg %p66
        %p349 = pneg %p90
        %p350 = pneg %p87
        %p351 = pneg %p111
        %p352 = pneg %p108
        %p353 = pneg %p132
        %p354 = pneg %p129
        %p355 = pneg %p153
        %p356 = pneg %p150
        %p357 = pneg %p174
        %p358 = pneg %p171
        %p359 = pneg %p195
        %p360 = pneg %p192
        %p361 = pneg %p221
        %p362 = pneg %p218
        %s363 = sand.u32 %s208, 1
        %s364 = scalar_lea.sflag [#allocation6], %s363
        %s365 = sand.u32 %s208, 1
        %s366 = smul.addr %s365, 16
        %s367 = scalar_lea.vmem [#allocation12], %s366
        %vm369 = vcmask 582656
        %370 = vst.msk [vmem:[#allocation2] sm:$0x3] %vm369, 0.0
        %371 = vst.msk [vmem:[#allocation2 + $0x12] sm:$0x3] %vm369, 0.0
        %vm372 = vcmask 31744
        %373 = vst.msk [vmem:[#allocation2 + $0x2] sm:$0xff] %vm372, 0.0
        %374 = vst.msk [vmem:[#allocation2 + $0xa] sm:$0xff] %vm372, 0.0
        %vm375 = vcmask 589344
        %376 = vst.msk [vmem:[#allocation2 + $0x2] sm:$0xff] %vm375, 0.0
        %377 = vst.msk [vmem:[#allocation2 + $0xa] sm:$0xff] %vm375, 0.0
        %v378 = vld [vmem:[%s323] sm:$0xf]
        %v379 = vld [vmem:[%s323 + $0x4] sm:$0xf]
        %v380 = vunpack.c.l.bf16 %v378
        %v381 = vunpack.c.l.bf16 %v379
        %384 = vrot.lane.b32.xlu0 %v380, 4
        %v385 = vpop.permute.xlu0 %384
        %386 = vrot.lane.b32.xlu0 %v381, 4
        %v387 = vpop.permute.xlu0 %386
        %vm390 = vcmask 556064
        %391 = vst.msk [vmem:[#allocation2 + $0x2] sm:$0xff] %vm390, %v385
        %392 = vst.msk [vmem:[#allocation2 + $0xa] sm:$0xff] %vm390, %v387
        %vm393 = vcmask 64512
        %394 = vst.msk [vmem:[#allocation3] sm:$0xff] %vm393, 0.0
        %395 = vst.msk [vmem:[#allocation3 + $0x10] sm:$0xff] %vm393, 0.0
        %vm396 = vcmask 58368
        %397 = vst.msk [vmem:[#allocation3 + $0x20] sm:$0x3] %vm396, 0.0
        %vm398 = vcmask 130112
        %399 = vst.msk [vmem:[#allocation3 + $0x8] sm:$0xff] %vm398, 0.0
        %400 = vst.msk [vmem:[#allocation3 + $0x18] sm:$0xff] %vm398, 0.0
        %vm401 = vcmask 123968
        %402 = vst.msk [vmem:[#allocation3 + $0x28] sm:$0x3] %vm401, 0.0
        %v403 = vld [vmem:[%s2] sm:$0x1]
        %v404 = vld [vmem:[%s3] sm:$0x1]
        %v405 = vld [vmem:[%s5] sm:$0x1]
        %v406 = vld [vmem:[%s6] sm:$0x1]
        %v407 = vld [vmem:[#allocation2] sm:$0xff]
        %v408 = vld [vmem:[#allocation2 + $0x8] sm:$0xff]
        %v409 = vld [vmem:[#allocation2 + $0x10] sm:$0x3]
        %v410 = vpack.c.bf16 %v408, %v407
        %v411 = vpack.c.bf16 %v409, %v409
        %v412 = vld [vmem:[#allocation7] sm:$0xf]
        %v413 = vld [vmem:[#allocation7 + $0x4] sm:$0xf]
        %v414 = vld [vmem:[#allocation7 + $0x8] sm:$0xf]
        %v415 = vld [vmem:[#allocation7 + $0xc] sm:$0xf]
        %v416 = vld [vmem:[#allocation7 + $0x10] sm:$0xf]
        %v417 = vld [vmem:[#allocation7 + $0x14] sm:$0xf]
        %v418 = vld [vmem:[#allocation7 + $0x18] sm:$0xf]
        %v419 = vld [vmem:[#allocation7 + $0x1c] sm:$0xf]
        %v420 = vld [vmem:[#allocation7 + $0x20] sm:$0xf]
        %v421 = vld [vmem:[#allocation2 + $0x1] sm:$0xff]
        %v422 = vld [vmem:[#allocation2 + $0x9] sm:$0xff]
        %v423 = vld [vmem:[#allocation2 + $0x11] sm:$0x3]
        %v424 = vpack.c.bf16 %v422, %v421
        %v425 = vpack.c.bf16 %v423, %v423
        %s426 = scalar_lea.vmem [#allocation7], 36
        %v427 = vld [vmem:[%s426] sm:$0xf]
        %v428 = vld [vmem:[%s426 + $0x4] sm:$0xf]
        %v429 = vld [vmem:[%s426 + $0x8] sm:$0xf]
        %v430 = vld [vmem:[%s426 + $0xc] sm:$0xf]
        %v431 = vld [vmem:[%s426 + $0x10] sm:$0xf]
        %v432 = vld [vmem:[%s426 + $0x14] sm:$0xf]
        %v433 = vld [vmem:[%s426 + $0x18] sm:$0xf]
        %v434 = vld [vmem:[%s426 + $0x1c] sm:$0xf]
        %v435 = vld [vmem:[%s426 + $0x20] sm:$0xf]
        %v445 = vunpack.c.l.b16 %v427
        %v446 = vunpack.c.l.b16 %v428
        %v447 = vunpack.c.l.b16 %v429
        %v448 = vunpack.c.l.b16 %v430
        %v449 = vunpack.c.l.b16 %v431
        %v450 = vunpack.c.l.b16 %v432
        %v451 = vunpack.c.l.b16 %v433
        %v452 = vunpack.c.l.b16 %v434
        %v453 = vunpack.c.l.b16 %v435
        %v454 = vpack.c.b16 %v446, %v445
        %v455 = vpack.c.b16 %v448, %v447
        %v456 = vpack.c.b16 %v450, %v449
        %v457 = vpack.c.b16 %v452, %v451
        %v458 = vpack.c.b16 %v453, %v453
        %vm463 = vcmask 588800
        %v465 = vsel %vm463, %v424, 0
        %v468 = vsel %vm463, %v425, 0
        %vm470 = vcmask 1043456
        %v472 = vsel %vm470, %v458, 0
        %474 = vmatprep.subr.bf16.mxu0 0
        %475 = vmatpush1.bf16.msra.mxu0 0
        %476 = vmatprep.subr.bf16.mxu0 0
        %477 = vmatpush1.bf16.msra.mxu0 0
        %478 = vmatprep.subr.bf16.mxu0 0
        %479 = vmatpush1.bf16.msra.mxu0 0
        %480 = vmatprep.subr.bf16.mxu0 0
        %481 = vmatpush1.bf16.msra.mxu0 %v472
        %482 = vmatprep.subr.bf16.mxu0 0
        %483 = vmatpush1.bf16.msra.mxu0 %v457
        %484 = vmatprep.subr.bf16.mxu0 0
        %485 = vmatpush1.bf16.msra.mxu0 %v456
        %486 = vmatprep.subr.bf16.mxu0 0
        %487 = vmatpush1.bf16.msra.mxu0 %v455
        %488 = vmatprep.subr.bf16.mxu0 0
        %489 = vmatpush1.bf16.msra.mxu0 %v454
        %490 = vmatprep.subr.bf16.mxu0 0
        %491 = vmatpush2.bf16.msra.mxu0 0
        %492 = vmatprep.subr.bf16.mxu0 0
        %493 = vmatpush2.bf16.msra.mxu0 0
        %494 = vmatprep.subr.bf16.mxu0 0
        %495 = vmatpush2.bf16.msra.mxu0 0
        %496 = vmatprep.subr.bf16.mxu0 0
        %497 = vmatpush2.bf16.msra.mxu0 0
        %498 = vmatprep.subr.bf16.mxu0 0
        %499 = vmatpush2.bf16.msra.mxu0 0
        %500 = vmatprep.subr.bf16.mxu0 0
        %501 = vmatpush2.bf16.msra.mxu0 0
        %502 = vmatprep.subr.bf16.mxu0 0
        %503 = vmatpush2.bf16.msra.mxu0 0
        %504 = vmatprep.subr.bf16.mxu0 0
        %505 = vmatpush2.bf16.msra.mxu0 0
        %506 = vmatprep.mubr.bf16.mxu0 0
        %507 = vmatmul.mubr.bf16.gmra.mxu0 %v465
        %v508 = vpop.f32.mrf.mxu0
        %v509 = vadd.f32 0.0, %v508
        %v510 = vpop.f32.mrf.mxu0
        %v511 = vpop.f32.mrf.mxu0
        %v512 = vadd.f32 0.0, %v511
        %v513 = vpop.f32.mrf.mxu0
        %514 = vmatprep.mubr.bf16.mxu0 0
        %515 = vmatmul.mubr.bf16.gmra.mxu0 %v468
        %v516 = vpop.f32.mrf.mxu0
        %v517 = vadd.f32 0.0, %v516
        %v518 = vpop.f32.mrf.mxu0
        %v519 = vpop.f32.mrf.mxu0
        %v520 = vpop.f32.mrf.mxu0
        %521 = vdwg.mxu0
        %v531 = vunpack.c.l.b16 %v412
        %v532 = vunpack.c.l.b16 %v413
        %v533 = vunpack.c.l.b16 %v414
        %v534 = vunpack.c.l.b16 %v415
        %v535 = vunpack.c.l.b16 %v416
        %v536 = vunpack.c.l.b16 %v417
        %v537 = vunpack.c.l.b16 %v418
        %v538 = vunpack.c.l.b16 %v419
        %v539 = vunpack.c.l.b16 %v420
        %v540 = vpack.c.b16 %v532, %v531
        %v541 = vpack.c.b16 %v534, %v533
        %v542 = vpack.c.b16 %v536, %v535
        %v543 = vpack.c.b16 %v538, %v537
        %v544 = vpack.c.b16 %v539, %v539
        %v550 = vsel %vm463, %v410, 0
        %v553 = vsel %vm463, %v411, 0
        %v556 = vsel %vm470, %v544, 0
        %558 = vmatprep.subr.bf16.mxu0 0
        %559 = vmatpush1.bf16.msra.mxu0 0
        %560 = vmatprep.subr.bf16.mxu0 0
        %561 = vmatpush1.bf16.msra.mxu0 0
        %562 = vmatprep.subr.bf16.mxu0 0
        %563 = vmatpush1.bf16.msra.mxu0 0
        %564 = vmatprep.subr.bf16.mxu0 0
        %565 = vmatpush1.bf16.msra.mxu0 %v556
        %566 = vmatprep.subr.bf16.mxu0 0
        %567 = vmatpush1.bf16.msra.mxu0 %v543
        %568 = vmatprep.subr.bf16.mxu0 0
        %569 = vmatpush1.bf16.msra.mxu0 %v542
        %570 = vmatprep.subr.bf16.mxu0 0
        %571 = vmatpush1.bf16.msra.mxu0 %v541
        %572 = vmatprep.subr.bf16.mxu0 0
        %573 = vmatpush1.bf16.msra.mxu0 %v540
        %574 = vmatprep.subr.bf16.mxu0 0
        %575 = vmatpush2.bf16.msra.mxu0 0
        %576 = vmatprep.subr.bf16.mxu0 0
        %577 = vmatpush2.bf16.msra.mxu0 0
        %578 = vmatprep.subr.bf16.mxu0 0
        %579 = vmatpush2.bf16.msra.mxu0 0
        %580 = vmatprep.subr.bf16.mxu0 0
        %581 = vmatpush2.bf16.msra.mxu0 0
        %582 = vmatprep.subr.bf16.mxu0 0
        %583 = vmatpush2.bf16.msra.mxu0 0
        %584 = vmatprep.subr.bf16.mxu0 0
        %585 = vmatpush2.bf16.msra.mxu0 0
        %586 = vmatprep.subr.bf16.mxu0 0
        %587 = vmatpush2.bf16.msra.mxu0 0
        %588 = vmatprep.subr.bf16.mxu0 0
        %589 = vmatpush2.bf16.msra.mxu0 0
        %590 = vmatprep.mubr.bf16.mxu0 0
        %591 = vmatmul.mubr.bf16.gmra.mxu0 %v550
        %v592 = vpop.f32.mrf.mxu0
        %v593 = vadd.f32 %v509, %v592
        %v594 = vpop.f32.mrf.mxu0
        %v595 = vpop.f32.mrf.mxu0
        %v596 = vadd.f32 %v512, %v595
        %v597 = vpop.f32.mrf.mxu0
        %598 = vmatprep.mubr.bf16.mxu0 0
        %599 = vmatmul.mubr.bf16.gmra.mxu0 %v553
        %v600 = vpop.f32.mrf.mxu0
        %v601 = vadd.f32 %v517, %v600
        %v602 = vpop.f32.mrf.mxu0
        %v603 = vpop.f32.mrf.mxu0
        %v604 = vpop.f32.mrf.mxu0
        %605 = vdwg.mxu0
        %v606 = vld [vmem:[#allocation2 + $0x2] sm:$0xff]
        %v607 = vld [vmem:[#allocation2 + $0xa] sm:$0xff]
        %v608 = vld [vmem:[#allocation2 + $0x12] sm:$0x3]
        %v609 = vpack.c.bf16 %v607, %v606
        %v610 = vpack.c.bf16 %v608, %v608
        %s611 = scalar_lea.vmem [#allocation7], 72
        %v612 = vld [vmem:[%s611] sm:$0xf]
        %v613 = vld [vmem:[%s611 + $0x4] sm:$0xf]
        %v614 = vld [vmem:[%s611 + $0x8] sm:$0xf]
        %v615 = vld [vmem:[%s611 + $0xc] sm:$0xf]
        %v616 = vld [vmem:[%s611 + $0x10] sm:$0xf]
        %v617 = vld [vmem:[%s611 + $0x14] sm:$0xf]
        %v618 = vld [vmem:[%s611 + $0x18] sm:$0xf]
        %v619 = vld [vmem:[%s611 + $0x1c] sm:$0xf]
        %v620 = vld [vmem:[%s611 + $0x20] sm:$0xf]
        %v630 = vunpack.c.l.b16 %v612
        %v631 = vunpack.c.l.b16 %v613
        %v632 = vunpack.c.l.b16 %v614
        %v633 = vunpack.c.l.b16 %v615
        %v634 = vunpack.c.l.b16 %v616
        %v635 = vunpack.c.l.b16 %v617
        %v636 = vunpack.c.l.b16 %v618
        %v637 = vunpack.c.l.b16 %v619
        %v638 = vunpack.c.l.b16 %v620
        %v639 = vpack.c.b16 %v631, %v630
        %v640 = vpack.c.b16 %v633, %v632
        %v641 = vpack.c.b16 %v635, %v634
        %v642 = vpack.c.b16 %v637, %v636
        %v643 = vpack.c.b16 %v638, %v638
        %v649 = vsel %vm463, %v609, 0
        %v652 = vsel %vm463, %v610, 0
        %v655 = vsel %vm470, %v643, 0
        %657 = vmatprep.subr.bf16.mxu0 0
        %658 = vmatpush1.bf16.msra.mxu0 0
        %659 = vmatprep.subr.bf16.mxu0 0
        %660 = vmatpush1.bf16.msra.mxu0 0
        %661 = vmatprep.subr.bf16.mxu0 0
        %662 = vmatpush1.bf16.msra.mxu0 0
        %663 = vmatprep.subr.bf16.mxu0 0
        %664 = vmatpush1.bf16.msra.mxu0 %v655
        %665 = vmatprep.subr.bf16.mxu0 0
        %666 = vmatpush1.bf16.msra.mxu0 %v642
        %667 = vmatprep.subr.bf16.mxu0 0
        %668 = vmatpush1.bf16.msra.mxu0 %v641
        %669 = vmatprep.subr.bf16.mxu0 0
        %670 = vmatpush1.bf16.msra.mxu0 %v640
        %671 = vmatprep.subr.bf16.mxu0 0
        %672 = vmatpush1.bf16.msra.mxu0 %v639
        %673 = vmatprep.subr.bf16.mxu0 0
        %674 = vmatpush2.bf16.msra.mxu0 0
        %675 = vmatprep.subr.bf16.mxu0 0
        %676 = vmatpush2.bf16.msra.mxu0 0
        %677 = vmatprep.subr.bf16.mxu0 0
        %678 = vmatpush2.bf16.msra.mxu0 0
        %679 = vmatprep.subr.bf16.mxu0 0
        %680 = vmatpush2.bf16.msra.mxu0 0
        %681 = vmatprep.subr.bf16.mxu0 0
        %682 = vmatpush2.bf16.msra.mxu0 0
        %683 = vmatprep.subr.bf16.mxu0 0
        %684 = vmatpush2.bf16.msra.mxu0 0
        %685 = vmatprep.subr.bf16.mxu0 0
        %686 = vmatpush2.bf16.msra.mxu0 0
        %687 = vmatprep.subr.bf16.mxu0 0
        %688 = vmatpush2.bf16.msra.mxu0 0
        %689 = vmatprep.mubr.bf16.mxu0 0
        %690 = vmatmul.mubr.bf16.gmra.mxu0 %v649
        %v691 = vpop.f32.mrf.mxu0
        %v692 = vadd.f32 0.0, %v691
        %v693 = vpop.f32.mrf.mxu0
        %v694 = vpop.f32.mrf.mxu0
        %v695 = vadd.f32 0.0, %v694
        %v696 = vpop.f32.mrf.mxu0
        %697 = vmatprep.mubr.bf16.mxu0 0
        %698 = vmatmul.mubr.bf16.gmra.mxu0 %v652
        %v699 = vpop.f32.mrf.mxu0
        %v700 = vadd.f32 0.0, %v699
        %v701 = vpop.f32.mrf.mxu0
        %v702 = vpop.f32.mrf.mxu0
        %v703 = vpop.f32.mrf.mxu0
        %704 = vdwg.mxu0
        %v705 = vadd.f32 %v593, %v692
        %v706 = vadd.f32 %v596, %v695
        %v707 = vadd.f32 %v601, %v700
        %v709 = vlaneseq
        %v710 = vshrl.u32 %v709, 7
        %v711 = vsub.s32 0, %v710
        %v712 = vrot.slane %v403, %v711
        %v714 = vmul.f32 %v705, %v712
        %v715 = vmul.f32 %v706, %v712
        %v716 = vmul.f32 %v707, %v712
        %v718 = vlaneseq
        %v719 = vshrl.u32 %v718, 7
        %v720 = vsub.s32 0, %v719
        %v721 = vrot.slane %v404, %v720
        %v723 = vadd.f32 %v714, %v721
        %v724 = vadd.f32 %v715, %v721
        %v725 = vadd.f32 %v716, %v721
        %v726 = vmax.f32 %v723, 0.0
        %v727 = vmax.f32 %v724, 0.0
        %v728 = vmax.f32 %v725, 0.0
        %v729 = vlaneseq
        %v730 = vshrl.u32 %v729, 7
        %v731 = vadd.s32 %v730, 8
        %v732 = vadd.s32 %v730, 16
        %v733 = vadd.s32 %v730, 4294967295
        %v734 = vadd.s32 %v731, 4294967295
        %v735 = vadd.s32 %v732, 4294967295
        %vm736 = vcmp.ge.s32.totalorder %v733, 0
        %vm737 = vcmp.ge.s32.totalorder %v734, 0
        %vm738 = vcmp.ge.s32.totalorder %v735, 0
        %vm739 = vcmp.lt.s32.totalorder %v733, 16
        %vm740 = vcmp.lt.s32.totalorder %v734, 16
        %vm741 = vcmp.lt.s32.totalorder %v735, 16
        %vm742 = vmand %vm736, %vm739
        %vm743 = vmand %vm737, %vm740
        %vm744 = vmand %vm738, %vm741
        %v745 = vsel %vm742, 1, 0
        %v746 = vsel %vm743, 1, 0
        %v747 = vsel %vm744, 1, 0
        %vm748 = vcmp.eq.s32.totalorder %v745, 1
        %vm749 = vcmp.eq.s32.totalorder %v746, 1
        %vm750 = vcmp.eq.s32.totalorder %v747, 1
        %v751 = vsel %vm748, %v726, 0.0
        %v752 = vsel %vm749, %v727, 0.0
        %v753 = vsel %vm750, %v728, 0.0
        %757 = vrot.lane.b32.xlu0 %v751, 8
        %v758 = vpop.permute.xlu0 %757
        %759 = vrot.lane.b32.xlu0 %v752, 8
        %v760 = vpop.permute.xlu0 %759
        %761 = vrot.lane.b32.xlu0 %v753, 8
        %v762 = vpop.permute.xlu0 %761
        %vm766 = vcmask 1047616
        %767 = vst.msk [vmem:[#allocation3] sm:$0xff] %vm766, %v758
        %768 = vst.msk [vmem:[#allocation3 + $0x8] sm:$0xff] %vm393, %v758
        %769 = vst.msk [vmem:[#allocation3 + $0x10] sm:$0xff] %vm766, %v760
        %770 = vst.msk [vmem:[#allocation3 + $0x18] sm:$0xff] %vm393, %v760
        %vm771 = vcmask 1041472
        %772 = vst.msk [vmem:[#allocation3 + $0x20] sm:$0x3] %vm771, %v762
        %773 = vst.msk [vmem:[#allocation3 + $0x28] sm:$0x3] %vm396, %v762
        %v774 = vld [vmem:[#allocation3] sm:$0xff]
        %v775 = vld [vmem:[#allocation3 + $0x8] sm:$0xff]
        %v776 = vld [vmem:[#allocation3 + $0x10] sm:$0xff]
        %v777 = vld [vmem:[#allocation3 + $0x18] sm:$0xff]
        %v778 = vpack.c.bf16 %v776, %v774
        %v779 = vpack.c.bf16 %v777, %v775
        %v780 = vld [vmem:[#allocation9] sm:$0xf]
        %v781 = vld [vmem:[#allocation9 + $0x4] sm:$0xf]
        %v782 = vld [vmem:[#allocation9 + $0x8] sm:$0xf]
        %v783 = vld [vmem:[#allocation9 + $0xc] sm:$0xf]
        %v784 = vld [vmem:[#allocation9 + $0x10] sm:$0xf]
        %v785 = vld [vmem:[#allocation9 + $0x14] sm:$0xf]
        %v786 = vld [vmem:[#allocation9 + $0x18] sm:$0xf]
        %v787 = vld [vmem:[#allocation9 + $0x1c] sm:$0xf]
        %v788 = vld [vmem:[#allocation9 + $0x20] sm:$0xf]
        %v789 = vld [vmem:[#allocation9 + $0x24] sm:$0xf]
        %v790 = vld [vmem:[#allocation9 + $0x28] sm:$0xf]
        %v791 = vld [vmem:[#allocation9 + $0x2c] sm:$0xf]
        %v792 = vld [vmem:[#allocation9 + $0x30] sm:$0xf]
        %v793 = vld [vmem:[#allocation9 + $0x34] sm:$0xf]
        %v794 = vld [vmem:[#allocation9 + $0x38] sm:$0xf]
        %v795 = vld [vmem:[#allocation9 + $0x3c] sm:$0xf]
        %v796 = vld [vmem:[#allocation9 + $0x40] sm:$0xf]
        %v797 = vld [vmem:[#allocation9 + $0x44] sm:$0xf]
        %v798 = vld [vmem:[#allocation3] sm:$0xfe]
        %v799 = vld [vmem:[#allocation3 + $0x8] sm:$0xfe]
        %v800 = vld [vmem:[#allocation3 + $0x20] sm:$0x1]
        %v801 = vld [vmem:[#allocation3 + $0x28] sm:$0x1]
        %v802 = vpack.c.bf16 %v776, %v798
        %v803 = vpack.c.bf16 %v777, %v799
        %v804 = vpack.c.bf16 %v800, %v800
        %v805 = vpack.c.bf16 %v801, %v801
        %s806 = scalar_lea.vmem [#allocation9], 72
        %v807 = vld [vmem:[%s806] sm:$0xf]
        %v808 = vld [vmem:[%s806 + $0x4] sm:$0xf]
        %v809 = vld [vmem:[%s806 + $0x8] sm:$0xf]
        %v810 = vld [vmem:[%s806 + $0xc] sm:$0xf]
        %v811 = vld [vmem:[%s806 + $0x10] sm:$0xf]
        %v812 = vld [vmem:[%s806 + $0x14] sm:$0xf]
        %v813 = vld [vmem:[%s806 + $0x18] sm:$0xf]
        %v814 = vld [vmem:[%s806 + $0x1c] sm:$0xf]
        %v815 = vld [vmem:[%s806 + $0x20] sm:$0xf]
        %v816 = vld [vmem:[%s806 + $0x24] sm:$0xf]
        %v817 = vld [vmem:[%s806 + $0x28] sm:$0xf]
        %v818 = vld [vmem:[%s806 + $0x2c] sm:$0xf]
        %v819 = vld [vmem:[%s806 + $0x30] sm:$0xf]
        %v820 = vld [vmem:[%s806 + $0x34] sm:$0xf]
        %v821 = vld [vmem:[%s806 + $0x38] sm:$0xf]
        %v822 = vld [vmem:[%s806 + $0x3c] sm:$0xf]
        %v823 = vld [vmem:[%s806 + $0x40] sm:$0xf]
        %v824 = vld [vmem:[%s806 + $0x44] sm:$0xf]
        %vm825 = vsmask.f32 7424
        %v827 = vshrl.u32 %v802, 16
        %v829 = vshll.u32 %v802, 16
        %v831 = vrot.slane %v829, 1
        %v832 = vor.u32 %v827, %v831
        %v834 = vshll.u32 %v804, 16
        %v836 = vrot.slane %v834, 1
        %v837 = vsel %vm825, %v832, %v836
        %v839 = vshrl.u32 %v803, 16
        %v841 = vshll.u32 %v803, 16
        %v843 = vrot.slane %v841, 1
        %v844 = vor.u32 %v839, %v843
        %v846 = vshll.u32 %v805, 16
        %v848 = vrot.slane %v846, 1
        %v849 = vsel %vm825, %v844, %v848
        %v869 = vunpack.c.l.b16 %v807
        %v870 = vunpack.c.l.b16 %v808
        %v871 = vunpack.c.l.b16 %v809
        %v872 = vunpack.c.l.b16 %v810
        %v873 = vunpack.c.l.b16 %v811
        %v874 = vunpack.c.l.b16 %v812
        %v875 = vunpack.c.l.b16 %v813
        %v876 = vunpack.c.l.b16 %v814
        %v877 = vunpack.c.l.b16 %v815
        %v878 = vunpack.c.l.b16 %v816
        %v879 = vunpack.c.l.b16 %v817
        %v880 = vunpack.c.l.b16 %v818
        %v881 = vunpack.c.l.b16 %v819
        %v882 = vunpack.c.l.b16 %v820
        %v883 = vunpack.c.l.b16 %v821
        %v884 = vunpack.c.l.b16 %v822
        %v885 = vunpack.c.l.b16 %v823
        %v886 = vunpack.c.l.b16 %v824
        %v887 = vpack.c.b16 %v870, %v869
        %v888 = vpack.c.b16 %v872, %v871
        %v889 = vpack.c.b16 %v874, %v873
        %v890 = vpack.c.b16 %v876, %v875
        %v891 = vpack.c.b16 %v878, %v877
        %v892 = vpack.c.b16 %v880, %v879
        %v893 = vpack.c.b16 %v882, %v881
        %v894 = vpack.c.b16 %v884, %v883
        %v895 = vpack.c.b16 %v886, %v885
        %vm905 = vcmask 130048
        %v907 = vsel %vm905, %v849, 0
        %909 = vmatprep.subr.bf16.mxu0 0
        %910 = vmatpush1.bf16.msra.mxu0 %v894
        %911 = vmatprep.subr.bf16.mxu0 0
        %912 = vmatpush1.bf16.msra.mxu0 %v893
        %913 = vmatprep.subr.bf16.mxu0 0
        %914 = vmatpush1.bf16.msra.mxu0 %v892
        %915 = vmatprep.subr.bf16.mxu0 0
        %916 = vmatpush1.bf16.msra.mxu0 %v891
        %917 = vmatprep.subr.bf16.mxu0 0
        %918 = vmatpush1.bf16.msra.mxu0 %v890
        %919 = vmatprep.subr.bf16.mxu0 0
        %920 = vmatpush1.bf16.msra.mxu0 %v889
        %921 = vmatprep.subr.bf16.mxu0 0
        %922 = vmatpush1.bf16.msra.mxu0 %v888
        %923 = vmatprep.subr.bf16.mxu0 0
        %924 = vmatpush1.bf16.msra.mxu0 %v887
        %925 = vmatprep.subr.bf16.mxu0 0
        %926 = vmatpush2.bf16.msra.mxu0 0
        %927 = vmatprep.subr.bf16.mxu0 0
        %928 = vmatpush2.bf16.msra.mxu0 0
        %929 = vmatprep.subr.bf16.mxu0 0
        %930 = vmatpush2.bf16.msra.mxu0 0
        %931 = vmatprep.subr.bf16.mxu0 0
        %932 = vmatpush2.bf16.msra.mxu0 0
        %933 = vmatprep.subr.bf16.mxu0 0
        %934 = vmatpush2.bf16.msra.mxu0 0
        %935 = vmatprep.subr.bf16.mxu0 0
        %936 = vmatpush2.bf16.msra.mxu0 0
        %937 = vmatprep.subr.bf16.mxu0 0
        %938 = vmatpush2.bf16.msra.mxu0 0
        %939 = vmatprep.subr.bf16.mxu0 0
        %940 = vmatpush2.bf16.msra.mxu0 %v895
        %941 = vmatprep.mubr.bf16.mxu0 %v907
        %942 = vmatmul.mubr.bf16.gmra.mxu0 %v837
        %v943 = vpop.f32.mrf.mxu0
        %v944 = vadd.f32 0.0, %v943
        %v945 = vpop.f32.mrf.mxu0
        %v946 = vpop.f32.mrf.mxu0
        %v947 = vadd.f32 0.0, %v946
        %v948 = vpop.f32.mrf.mxu0
        %949 = vdwg.mxu0
        %v968 = vunpack.c.l.b16 %v780
        %v969 = vunpack.c.l.b16 %v781
        %v970 = vunpack.c.l.b16 %v782
        %v971 = vunpack.c.l.b16 %v783
        %v972 = vunpack.c.l.b16 %v784
        %v973 = vunpack.c.l.b16 %v785
        %v974 = vunpack.c.l.b16 %v786
        %v975 = vunpack.c.l.b16 %v787
        %v976 = vunpack.c.l.b16 %v788
        %v977 = vunpack.c.l.b16 %v789
        %v978 = vunpack.c.l.b16 %v790
        %v979 = vunpack.c.l.b16 %v791
        %v980 = vunpack.c.l.b16 %v792
        %v981 = vunpack.c.l.b16 %v793
        %v982 = vunpack.c.l.b16 %v794
        %v983 = vunpack.c.l.b16 %v795
        %v984 = vunpack.c.l.b16 %v796
        %v985 = vunpack.c.l.b16 %v797
        %v986 = vpack.c.b16 %v969, %v968
        %v987 = vpack.c.b16 %v971, %v970
        %v988 = vpack.c.b16 %v973, %v972
        %v989 = vpack.c.b16 %v975, %v974
        %v990 = vpack.c.b16 %v977, %v976
        %v991 = vpack.c.b16 %v979, %v978
        %v992 = vpack.c.b16 %v981, %v980
        %v993 = vpack.c.b16 %v983, %v982
        %v994 = vpack.c.b16 %v985, %v984
        %v1005 = vsel %vm905, %v779, 0
        %1007 = vmatprep.subr.bf16.mxu0 0
        %1008 = vmatpush1.bf16.msra.mxu0 %v993
        %1009 = vmatprep.subr.bf16.mxu0 0
        %1010 = vmatpush1.bf16.msra.mxu0 %v992
        %1011 = vmatprep.subr.bf16.mxu0 0
        %1012 = vmatpush1.bf16.msra.mxu0 %v991
        %1013 = vmatprep.subr.bf16.mxu0 0
        %1014 = vmatpush1.bf16.msra.mxu0 %v990
        %1015 = vmatprep.subr.bf16.mxu0 0
        %1016 = vmatpush1.bf16.msra.mxu0 %v989
        %1017 = vmatprep.subr.bf16.mxu0 0
        %1018 = vmatpush1.bf16.msra.mxu0 %v988
        %1019 = vmatprep.subr.bf16.mxu0 0
        %1020 = vmatpush1.bf16.msra.mxu0 %v987
        %1021 = vmatprep.subr.bf16.mxu0 0
        %1022 = vmatpush1.bf16.msra.mxu0 %v986
        %1023 = vmatprep.subr.bf16.mxu0 0
        %1024 = vmatpush2.bf16.msra.mxu0 0
        %1025 = vmatprep.subr.bf16.mxu0 0
        %1026 = vmatpush2.bf16.msra.mxu0 0
        %1027 = vmatprep.subr.bf16.mxu0 0
        %1028 = vmatpush2.bf16.msra.mxu0 0
        %1029 = vmatprep.subr.bf16.mxu0 0
        %1030 = vmatpush2.bf16.msra.mxu0 0
        %1031 = vmatprep.subr.bf16.mxu0 0
        %1032 = vmatpush2.bf16.msra.mxu0 0
        %1033 = vmatprep.subr.bf16.mxu0 0
        %1034 = vmatpush2.bf16.msra.mxu0 0
        %1035 = vmatprep.subr.bf16.mxu0 0
        %1036 = vmatpush2.bf16.msra.mxu0 0
        %1037 = vmatprep.subr.bf16.mxu0 0
        %1038 = vmatpush2.bf16.msra.mxu0 %v994
        %1039 = vmatprep.mubr.bf16.mxu0 %v1005
        %1040 = vmatmul.mubr.bf16.gmra.mxu0 %v778
        %v1041 = vpop.f32.mrf.mxu0
        %v1042 = vadd.f32 %v944, %v1041
        %v1043 = vpop.f32.mrf.mxu0
        %v1044 = vpop.f32.mrf.mxu0
        %v1045 = vadd.f32 %v947, %v1044
        %v1046 = vpop.f32.mrf.mxu0
        %1047 = vdwg.mxu0
        %v1048 = vld [vmem:[#allocation3] sm:$0xfc]
        %v1049 = vld [vmem:[#allocation3 + $0x8] sm:$0xfc]
        %v1050 = vld [vmem:[#allocation3 + $0x20] sm:$0x3]
        %v1051 = vld [vmem:[#allocation3 + $0x28] sm:$0x3]
        %v1052 = vpack.c.bf16 %v776, %v1048
        %v1053 = vpack.c.bf16 %v777, %v1049
        %v1054 = vpack.c.bf16 %v1050, %v1050
        %v1055 = vpack.c.bf16 %v1051, %v1051
        %s1056 = scalar_lea.vmem [#allocation9], 144
        %v1057 = vld [vmem:[%s1056] sm:$0xf]
        %v1058 = vld [vmem:[%s1056 + $0x4] sm:$0xf]
        %v1059 = vld [vmem:[%s1056 + $0x8] sm:$0xf]
        %v1060 = vld [vmem:[%s1056 + $0xc] sm:$0xf]
        %v1061 = vld [vmem:[%s1056 + $0x10] sm:$0xf]
        %v1062 = vld [vmem:[%s1056 + $0x14] sm:$0xf]
        %v1063 = vld [vmem:[%s1056 + $0x18] sm:$0xf]
        %v1064 = vld [vmem:[%s1056 + $0x1c] sm:$0xf]
        %v1065 = vld [vmem:[%s1056 + $0x20] sm:$0xf]
        %v1066 = vld [vmem:[%s1056 + $0x24] sm:$0xf]
        %v1067 = vld [vmem:[%s1056 + $0x28] sm:$0xf]
        %v1068 = vld [vmem:[%s1056 + $0x2c] sm:$0xf]
        %v1069 = vld [vmem:[%s1056 + $0x30] sm:$0xf]
        %v1070 = vld [vmem:[%s1056 + $0x34] sm:$0xf]
        %v1071 = vld [vmem:[%s1056 + $0x38] sm:$0xf]
        %v1072 = vld [vmem:[%s1056 + $0x3c] sm:$0xf]
        %v1073 = vld [vmem:[%s1056 + $0x40] sm:$0xf]
        %v1074 = vld [vmem:[%s1056 + $0x44] sm:$0xf]
        %vm1079 = vcmask 1046528
        %v1080 = vrot.slane %v1052, 1
        %v1081 = vrot.slane %v1054, 1
        %v1082 = vsel %vm1079, %v1080, %v1081
        %v1083 = vrot.slane %v1053, 1
        %v1084 = vrot.slane %v1055, 1
        %v1085 = vsel %vm1079, %v1083, %v1084
        %v1105 = vunpack.c.l.b16 %v1057
        %v1106 = vunpack.c.l.b16 %v1058
        %v1107 = vunpack.c.l.b16 %v1059
        %v1108 = vunpack.c.l.b16 %v1060
        %v1109 = vunpack.c.l.b16 %v1061
        %v1110 = vunpack.c.l.b16 %v1062
        %v1111 = vunpack.c.l.b16 %v1063
        %v1112 = vunpack.c.l.b16 %v1064
        %v1113 = vunpack.c.l.b16 %v1065
        %v1114 = vunpack.c.l.b16 %v1066
        %v1115 = vunpack.c.l.b16 %v1067
        %v1116 = vunpack.c.l.b16 %v1068
        %v1117 = vunpack.c.l.b16 %v1069
        %v1118 = vunpack.c.l.b16 %v1070
        %v1119 = vunpack.c.l.b16 %v1071
        %v1120 = vunpack.c.l.b16 %v1072
        %v1121 = vunpack.c.l.b16 %v1073
        %v1122 = vunpack.c.l.b16 %v1074
        %v1123 = vpack.c.b16 %v1106, %v1105
        %v1124 = vpack.c.b16 %v1108, %v1107
        %v1125 = vpack.c.b16 %v1110, %v1109
        %v1126 = vpack.c.b16 %v1112, %v1111
        %v1127 = vpack.c.b16 %v1114, %v1113
        %v1128 = vpack.c.b16 %v1116, %v1115
        %v1129 = vpack.c.b16 %v1118, %v1117
        %v1130 = vpack.c.b16 %v1120, %v1119
        %v1131 = vpack.c.b16 %v1122, %v1121
        %v1142 = vsel %vm905, %v1085, 0
        %1144 = vmatprep.subr.bf16.mxu0 0
        %1145 = vmatpush1.bf16.msra.mxu0 %v1130
        %1146 = vmatprep.subr.bf16.mxu0 0
        %1147 = vmatpush1.bf16.msra.mxu0 %v1129
        %1148 = vmatprep.subr.bf16.mxu0 0
        %1149 = vmatpush1.bf16.msra.mxu0 %v1128
        %1150 = vmatprep.subr.bf16.mxu0 0
        %1151 = vmatpush1.bf16.msra.mxu0 %v1127
        %1152 = vmatprep.subr.bf16.mxu0 0
        %1153 = vmatpush1.bf16.msra.mxu0 %v1126
        %1154 = vmatprep.subr.bf16.mxu0 0
        %1155 = vmatpush1.bf16.msra.mxu0 %v1125
        %1156 = vmatprep.subr.bf16.mxu0 0
        %1157 = vmatpush1.bf16.msra.mxu0 %v1124
        %1158 = vmatprep.subr.bf16.mxu0 0
        %1159 = vmatpush1.bf16.msra.mxu0 %v1123
        %1160 = vmatprep.subr.bf16.mxu0 0
        %1161 = vmatpush2.bf16.msra.mxu0 0
        %1162 = vmatprep.subr.bf16.mxu0 0
        %1163 = vmatpush2.bf16.msra.mxu0 0
        %1164 = vmatprep.subr.bf16.mxu0 0
        %1165 = vmatpush2.bf16.msra.mxu0 0
        %1166 = vmatprep.subr.bf16.mxu0 0
        %1167 = vmatpush2.bf16.msra.mxu0 0
        %1168 = vmatprep.subr.bf16.mxu0 0
        %1169 = vmatpush2.bf16.msra.mxu0 0
        %1170 = vmatprep.subr.bf16.mxu0 0
        %1171 = vmatpush2.bf16.msra.mxu0 0
        %1172 = vmatprep.subr.bf16.mxu0 0
        %1173 = vmatpush2.bf16.msra.mxu0 0
        %1174 = vmatprep.subr.bf16.mxu0 0
        %1175 = vmatpush2.bf16.msra.mxu0 %v1131
        %1176 = vmatprep.mubr.bf16.mxu0 %v1142
        %1177 = vmatmul.mubr.bf16.gmra.mxu0 %v1082
        %v1178 = vpop.f32.mrf.mxu0
        %v1179 = vadd.f32 0.0, %v1178
        %v1180 = vpop.f32.mrf.mxu0
        %v1181 = vpop.f32.mrf.mxu0
        %v1182 = vadd.f32 0.0, %v1181
        %v1183 = vpop.f32.mrf.mxu0
        %1184 = vdwg.mxu0
        %v1185 = vadd.f32 %v1042, %v1179
        %v1186 = vadd.f32 %v1045, %v1182
        %v1188 = vlaneseq
        %v1189 = vshrl.u32 %v1188, 7
        %v1190 = vsub.s32 0, %v1189
        %v1191 = vrot.slane %v405, %v1190
        %v1193 = vmul.f32 %v1185, %v1191
        %v1194 = vmul.f32 %v1186, %v1191
        %v1196 = vlaneseq
        %v1197 = vshrl.u32 %v1196, 7
        %v1198 = vsub.s32 0, %v1197
        %v1199 = vrot.slane %v406, %v1198
        %v1201 = vadd.f32 %v1193, %v1199
        %v1202 = vadd.f32 %v1194, %v1199
        %v1203 = vld [vmem:[#allocation2 + $0x2] sm:$0xff]
        %v1204 = vld [vmem:[#allocation2 + $0xa] sm:$0xff]
        %v1205 = vpack.c.bf16 %v1204, %v1203
        %v1206 = vld [vmem:[#allocation10] sm:$0xf]
        %v1207 = vld [vmem:[#allocation10 + $0x4] sm:$0xf]
        %v1208 = vld [vmem:[#allocation10 + $0x8] sm:$0xf]
        %v1209 = vld [vmem:[#allocation10 + $0xc] sm:$0xf]
        %v1210 = vld [vmem:[#allocation10 + $0x10] sm:$0xf]
        %v1211 = vld [vmem:[#allocation10 + $0x14] sm:$0xf]
        %v1212 = vld [vmem:[#allocation10 + $0x18] sm:$0xf]
        %v1213 = vld [vmem:[#allocation10 + $0x1c] sm:$0xf]
        %1215 = vrot.lane.b32.xlu0 %v1205, 124
        %v1216 = vpop.permute.xlu0 %1215
        %v1225 = vunpack.c.l.b16 %v1206
        %v1226 = vunpack.c.l.b16 %v1207
        %v1227 = vunpack.c.l.b16 %v1208
        %v1228 = vunpack.c.l.b16 %v1209
        %v1229 = vunpack.c.l.b16 %v1210
        %v1230 = vunpack.c.l.b16 %v1211
        %v1231 = vunpack.c.l.b16 %v1212
        %v1232 = vunpack.c.l.b16 %v1213
        %v1233 = vpack.c.b16 %v1226, %v1225
        %v1234 = vpack.c.b16 %v1228, %v1227
        %v1235 = vpack.c.b16 %v1230, %v1229
        %v1236 = vpack.c.b16 %v1232, %v1231
        %vm1241 = vcmask 523264
        %v1243 = vsel %vm1241, %v1216, 0
        %1245 = vmatprep.subr.bf16.mxu0 0
        %1246 = vmatpush1.bf16.msra.mxu0 0
        %1247 = vmatprep.subr.bf16.mxu0 0
        %1248 = vmatpush1.bf16.msra.mxu0 0
        %1249 = vmatprep.subr.bf16.mxu0 0
        %1250 = vmatpush1.bf16.msra.mxu0 0
        %1251 = vmatprep.subr.bf16.mxu0 0
        %1252 = vmatpush1.bf16.msra.mxu0 0
        %1253 = vmatprep.subr.bf16.mxu0 0
        %1254 = vmatpush1.bf16.msra.mxu0 %v1236
        %1255 = vmatprep.subr.bf16.mxu0 0
        %1256 = vmatpush1.bf16.msra.mxu0 %v1235
        %1257 = vmatprep.subr.bf16.mxu0 0
        %1258 = vmatpush1.bf16.msra.mxu0 %v1234
        %1259 = vmatprep.subr.bf16.mxu0 0
        %1260 = vmatpush1.bf16.msra.mxu0 %v1233
        %1261 = vmatprep.subr.bf16.mxu0 0
        %1262 = vmatpush2.bf16.msra.mxu0 0
        %1263 = vmatprep.subr.bf16.mxu0 0
        %1264 = vmatpush2.bf16.msra.mxu0 0
        %1265 = vmatprep.subr.bf16.mxu0 0
        %1266 = vmatpush2.bf16.msra.mxu0 0
        %1267 = vmatprep.subr.bf16.mxu0 0
        %1268 = vmatpush2.bf16.msra.mxu0 0
        %1269 = vmatprep.subr.bf16.mxu0 0
        %1270 = vmatpush2.bf16.msra.mxu0 0
        %1271 = vmatprep.subr.bf16.mxu0 0
        %1272 = vmatpush2.bf16.msra.mxu0 0
        %1273 = vmatprep.subr.bf16.mxu0 0
        %1274 = vmatpush2.bf16.msra.mxu0 0
        %1275 = vmatprep.subr.bf16.mxu0 0
        %1276 = vmatpush2.bf16.msra.mxu0 0
        %1277 = vmatprep.mubr.bf16.mxu0 0
        %1278 = vmatmul.mubr.bf16.gmra.mxu0 %v1243
        %v1279 = vpop.f32.mrf.mxu0
        %v1280 = vadd.f32 0.0, %v1279
        %v1281 = vpop.f32.mrf.mxu0
        %v1282 = vpop.f32.mrf.mxu0
        %v1283 = vadd.f32 0.0, %v1282
        %v1284 = vpop.f32.mrf.mxu0
        %1285 = vdwg.mxu0
        %v1286 = vadd.f32 %v1201, %v1280
        %v1287 = vadd.f32 %v1202, %v1283
        %1288 = vst [vmem:[%s367] sm:$0xff] %v1286
        %1289 = vst [vmem:[%s367 + $0x8] sm:$0xff] %v1287
        %s1290 = sand.u32 %s208, 1
        %s1291 = scalar_lea.sflag [#allocation6], %s1290
        %s1292 = sand.u32 %s208, 1
        %s1293 = smul.addr %s1292, 16
        %s1294 = scalar_lea.vmem [#allocation12], %s1293
        // Predicated region
        $region69: #{tpu_custom_call.1} parent=51 // pred_check
          %p1295 = pneg %p218
        $region70: #{tpu_custom_call.1} parent=51 // pred_check_branch
          %1297 = sbr.rel (%p1295) target = $region72
        $region71: #{tpu_custom_call.1} parent=51 // pred_region
          %s1299 = ssub.s32 256, 256
          %1300 = vsyncadd %s1291, %s1299
          %s1301 = smul.addr %s27, 2
          %s1302 = smul.addr %s1301, 128
          %s1303 = scalar_lea.hbm %s8, %s1302
          %s1304 = sshll.u32 %s1294, 4
          %s1305 = int_to_ptr.vmem [resolvable:$true] %s1304
          %1310 = dma.vmem_to_hbm [thread:$0]  %s1305, 256, %s1303, %s1291, 128, 128, 8
        $region72: #{tpu_custom_call.1} parent=51 // pred_fallthru
          _
      $region52: #{tpu_custom_call.1} parent=5 // pred_fallthru
        _
      %p1311 = scmp.le.s32.totalorder 2, %s22
      // Predicated region
      $region73: #{tpu_custom_call.1} parent=5 // pred_check
        %p1312 = pneg %p1311
      $region74: #{tpu_custom_call.1} parent=5 // pred_check_branch
        %1314 = sbr.rel (%p1312) target = $region76
      $region75: #{tpu_custom_call.1} parent=5 // pred_region
        %s1315 = ssub.s32 %s22, 2
        // Predicated region
        $region77: #{tpu_custom_call.1} parent=75 // pred_check
          %p1316 = pneg %p224
        $region78: #{tpu_custom_call.1} parent=75 // pred_check_branch
          %1318 = sbr.rel (%p1316) target = $region80
        $region79: #{tpu_custom_call.1} parent=75 // pred_region
          %s1319 = sand.u32 %s209, 1
          %s1320 = scalar_lea.sflag [#allocation6], %s1319
          %s1321 = sand.u32 %s209, 1
          %s1322 = smul.addr %s1321, 16
          %s1323 = scalar_lea.vmem [#allocation12], %s1322
          %1324 = dma.done %s1320, 256
        $region80: #{tpu_custom_call.1} parent=75 // pred_fallthru
          _
      $region76: #{tpu_custom_call.1} parent=5 // pred_fallthru
        _
    $region6: #{tpu_custom_call.1} parent=1 // loop_footer
      %s26 = sadd.s32 1, %s22
    $region7: #{tpu_custom_call.1} parent=1 // loop_footer_branch
      %21 = sbr.rel target = $region3
    $region8: #{tpu_custom_call.1} parent=1 // loop_exit
      _
    %1325 = vsyncpa [#allocation5], 1
    %s1326 = scalar_lea.sflag [#allocation5], 1
    %1327 = vsyncpa %s1326, 1
    %1328 = vsyncpa [#allocation8], 1
    %1329 = vsyncpa [#allocation11], 1
    %1330 = vsyncpa [#allocation6], 1
    %s1331 = scalar_lea.sflag [#allocation6], 1
    %1332 = vsyncpa %s1331, 1

</llo_original>
